<compile_context>
chip_gen: v6e
topology: v6e:2x2x1
jax: 0.10.0
libtpu: 0.0.40
codegen_flags: <defaults>
</compile_context>

<pallas_src>
import jax
import jax.numpy as jnp
from jax.experimental import pallas as pl
from jax.experimental.pallas import tpu as pltpu

EPS = 1e-5


def scoring_gin_kernel(x_ref, a_ref, wl_ref, bl_ref,
                       w1s_ref, g1s_ref, bt1s_ref,
                       w2s_ref, g2s_ref, bt2s_ref,
                       wh1_ref, bh1_ref, wh2_ref, bh2_ref,
                       score_ref, emb_ref):
    n = x_ref.shape[0]
    inv_n = 1.0 / n

    def batchnorm(h, gamma, beta):
        # One-pass batch statistics (biased variance, matches BatchNorm1d with
        # track_running_stats=False); gamma folded into the rsqrt scale so the
        # full-width activation sees exactly one mul and one add.
        mu = jnp.sum(h, axis=0, keepdims=True) * inv_n            # (1, F)
        ms = jnp.sum(h * h, axis=0, keepdims=True) * inv_n        # E[h^2]
        var = jnp.maximum(ms - mu * mu, 0.0)
        scale = gamma * jax.lax.rsqrt(var + EPS)                  # (1, F)
        shift = beta - mu * scale                                 # (1, F)
        return h * scale + shift

    a = a_ref[...]                                                # (N, N) adjacency
    # encoder input projection (bias kept: (I+A)@bias is degree-dependent).
    h = jnp.dot(x_ref[...], wl_ref[...],
                preferred_element_type=jnp.float32) + bl_ref[...]

    for k in range(3):                                            # three GINConv layers
        # propagate(aggr='add', message=x_j) == A @ h ;  (1+eps)*h with eps=0
        z = h + jnp.dot(a, h, preferred_element_type=jnp.float32)
        # MLPGIN.l1 bias cancels under the batch-stat BN that follows -> dropped.
        t = jnp.dot(z, w1s_ref[k], preferred_element_type=jnp.float32)
        t = jnp.maximum(batchnorm(t, g1s_ref[k], bt1s_ref[k]), 0.0)
        # MLPGIN.l2 bias cancels under the outer batch-stat bn_k -> dropped.
        t = jnp.dot(t, w2s_ref[k], preferred_element_type=jnp.float32)
        h = batchnorm(t, g2s_ref[k], bt2s_ref[k])
        if k < 2:
            h = jnp.maximum(h, 0.0)                               # layer 3 has no ReLU
        # TODO(synk): F.dropout(p=0.5) omitted -- eval-mode forward (identity).

    emb_ref[...] = h                                              # (N, E) lane-dense store

    s = jnp.maximum(jnp.dot(h, wh1_ref[...],
                            preferred_element_type=jnp.float32) + bh1_ref[...], 0.0)
    score_ref[...] = jnp.dot(s, wh2_ref[...],
                             preferred_element_type=jnp.float32) + bh2_ref[...]


def edges_to_dense_adjacency(edge_index, num_nodes):
    """A[dst, src] = multiplicity, so that A @ h == scatter-add of h[src] into dst."""
    src, dst = edge_index[0], edge_index[1]
    return jnp.zeros((num_nodes, num_nodes), jnp.float32).at[dst, src].add(1.0)


def scoring_gin(x, adjacency, p):
    """Fused scoringGIN forward.  Returns (score (N, num_vn), emb (N, emb_dim))."""
    n = x.shape[0]
    e = p["W_lin"].shape[1]
    vn = p["W_h2"].shape[1]
    vn_pad = pl.cdiv(vn, 128) * 128         # lane-dense score output -> unmasked stores
    wh2 = jnp.zeros((e, vn_pad), jnp.float32).at[:, :vn].set(p["W_h2"])
    bh2 = jnp.zeros((1, vn_pad), jnp.float32).at[:, :vn].set(p["b_h2"])

    vmem = pl.BlockSpec(memory_space=pltpu.MemorySpace.VMEM)
    score_pad, emb = pl.pallas_call(
        scoring_gin_kernel,
        out_shape=(jax.ShapeDtypeStruct((n, vn_pad), jnp.float32),
                   jax.ShapeDtypeStruct((n, e), jnp.float32)),
        in_specs=[vmem] * 14,
        out_specs=(vmem, vmem),
    )(x, adjacency, p["W_lin"], p["b_lin"],
      p["W1"], p["g_mlp"], p["bt_mlp"],
      p["W2"], p["g_out"], p["bt_out"],
      p["W_h1"], p["b_h1"], wh2, bh2)
    return score_pad[:, :vn], emb


def reference_forward(x, adjacency, p):
    """Pure-JAX mirror of the PyTorch scoringGIN forward (GINEncoder path,
    edge_attr=None, eval mode) INCLUDING the MLPGIN biases that the kernel
    drops (they cancel exactly under batch-statistic BatchNorm)."""
    def bn(h, gamma, beta):
        mu = jnp.mean(h, axis=0, keepdims=True)
        var = jnp.mean((h - mu) ** 2, axis=0, keepdims=True)
        return (h - mu) * jax.lax.rsqrt(var + EPS) * gamma + beta

    h = x @ p["W_lin"] + p["b_lin"]
    for k in range(3):
        z = h + adjacency @ h
        t = z @ p["W1"][k] + p["b1"][k]
        t = jnp.maximum(bn(t, p["g_mlp"][k], p["bt_mlp"][k]), 0.0)
        t = t @ p["W2"][k] + p["b2"][k]
        h = bn(t, p["g_out"][k], p["bt_out"][k])
        if k < 2:
            h = jnp.maximum(h, 0.0)
    emb = h
    s = jnp.maximum(emb @ p["W_h1"] + p["b_h1"], 0.0)
    score = s @ p["W_h2"] + p["b_h2"]
    return score, emb


if __name__ == "__main__":
    N, C, E, VN, NE = 32, 16, 128, 8, 96      # nodes, in_channels, emb_dim, num_vn, edges
    H = 2 * E

    key_iter = iter(jax.random.split(jax.random.PRNGKey(0), 64))
    nk = lambda: next(key_iter)

    x = jax.random.normal(nk(), (N, C), dtype=jnp.float32)
    src = jax.random.randint(nk(), (NE,), 0, N)
    dst = jax.random.randint(nk(), (NE,), 0, N)
    edge_index = jnp.stack([src, dst])
    adjacency = edges_to_dense_adjacency(edge_index, N)

    def lin_init(fan_in, w_shape, b_shape):
        bound = 1.0 / (fan_in ** 0.5)
        w = jax.random.uniform(nk(), w_shape, jnp.float32, -bound, bound)
        b = jax.random.uniform(nk(), b_shape, jnp.float32, -bound, bound)
        return w, b

    W_lin, b_lin = lin_init(C, (C, E), (1, E))

    W1, b1, W2, b2 = [], [], [], []
    g_mlp, bt_mlp, g_out, bt_out = [], [], [], []
    for _ in range(3):
        w1k, b1k = lin_init(E, (E, H), (1, H))
        w2k, b2k = lin_init(H, (H, E), (1, E))
        W1.append(w1k); b1.append(b1k); W2.append(w2k); b2.append(b2k)
        # Random BN affines (PyTorch default is weight=1, bias=0; random values
        # exercise the affine path while keeping identical semantics).
        g_mlp.append(jax.random.uniform(nk(), (1, H), jnp.float32, 0.5, 1.5))
        bt_mlp.append(jax.random.uniform(nk(), (1, H), jnp.float32, -0.5, 0.5))
        g_out.append(jax.random.uniform(nk(), (1, E), jnp.float32, 0.5, 1.5))
        bt_out.append(jax.random.uniform(nk(), (1, E), jnp.float32, -0.5, 0.5))

    W_h1, b_h1 = lin_init(E, (E, E), (1, E))
    W_h2, b_h2 = lin_init(E, (E, VN), (1, VN))

    params = dict(
        W_lin=W_lin, b_lin=b_lin,
        W1=jnp.stack(W1), b1=jnp.stack(b1),
        W2=jnp.stack(W2), b2=jnp.stack(b2),
        g_mlp=jnp.stack(g_mlp), bt_mlp=jnp.stack(bt_mlp),
        g_out=jnp.stack(g_out), bt_out=jnp.stack(bt_out),
        W_h1=W_h1, b_h1=b_h1, W_h2=W_h2, b_h2=b_h2,
    )

    score, emb = scoring_gin(x, adjacency, params)
    score = jax.block_until_ready(score)
    emb = jax.block_until_ready(emb)

    ref_score, ref_emb = reference_forward(x, adjacency, params)

    assert score.shape == (N, VN) and emb.shape == (N, E)
    assert jnp.allclose(emb, ref_emb, atol=5e-4, rtol=5e-4), "emb mismatch vs reference"
    assert jnp.allclose(score, ref_score, atol=5e-4, rtol=5e-4), "score mismatch vs reference"

    print("KERNEL_OK")
</pallas_src>

<mosaic_0001>
module attributes {stable_mosaic.version = 11 : i64} {
  func.func @scoring_gin_kernel(%arg0: memref<32x16xf32, #tpu.memory_space<vmem>>, %arg1: memref<32x32xf32, #tpu.memory_space<vmem>>, %arg2: memref<16x128xf32, #tpu.memory_space<vmem>>, %arg3: memref<1x128xf32, #tpu.memory_space<vmem>>, %arg4: memref<3x128x256xf32, #tpu.memory_space<vmem>>, %arg5: memref<3x1x256xf32, #tpu.memory_space<vmem>>, %arg6: memref<3x1x256xf32, #tpu.memory_space<vmem>>, %arg7: memref<3x256x128xf32, #tpu.memory_space<vmem>>, %arg8: memref<3x1x128xf32, #tpu.memory_space<vmem>>, %arg9: memref<3x1x128xf32, #tpu.memory_space<vmem>>, %arg10: memref<128x128xf32, #tpu.memory_space<vmem>>, %arg11: memref<1x128xf32, #tpu.memory_space<vmem>>, %arg12: memref<128x128xf32, #tpu.memory_space<vmem>>, %arg13: memref<1x128xf32, #tpu.memory_space<vmem>>, %arg14: memref<32x128xf32, #tpu.memory_space<vmem>>, %arg15: memref<32x128xf32, #tpu.memory_space<vmem>>) attributes {dimension_semantics = [], scalar_prefetch = 0 : i64, scratch_operands = 0 : i64, tpu.core_type = #tpu.core_type<tc>} {
    %c0 = arith.constant 0 : index
    %c0_0 = arith.constant 0 : index
    %0 = vector.load %arg1[%c0, %c0_0] : memref<32x32xf32, #tpu.memory_space<vmem>>, vector<32x32xf32>
    %c0_1 = arith.constant 0 : index
    %c0_2 = arith.constant 0 : index
    %1 = vector.load %arg0[%c0_1, %c0_2] : memref<32x16xf32, #tpu.memory_space<vmem>>, vector<32x16xf32>
    %c0_3 = arith.constant 0 : index
    %c0_4 = arith.constant 0 : index
    %2 = vector.load %arg2[%c0_3, %c0_4] : memref<16x128xf32, #tpu.memory_space<vmem>>, vector<16x128xf32>
    %cst = arith.constant dense<0.000000e+00> : vector<32x128xf32>
    %3 = tpu.matmul %1, %2, %cst {dimension_numbers = #tpu.dot_dimension_numbers<[1], [0], [0], [1], [0, 0, 1, 1], [], []>} : vector<32x16xf32>, vector<16x128xf32>, vector<32x128xf32> -> vector<32x128xf32>
    %c0_5 = arith.constant 0 : index
    %c0_6 = arith.constant 0 : index
    %4 = vector.load %arg3[%c0_5, %c0_6] : memref<1x128xf32, #tpu.memory_space<vmem>>, vector<1x128xf32>
    %5 = vector.broadcast %4 : vector<1x128xf32> to vector<32x128xf32>
    %6 = arith.addf %3, %5 : vector<32x128xf32>
    %cst_7 = arith.constant dense<0.000000e+00> : vector<32x128xf32>
    %7 = tpu.matmul %0, %6, %cst_7 {dimension_numbers = #tpu.dot_dimension_numbers<[1], [0], [0], [1], [0, 0, 1, 1], [], []>} : vector<32x32xf32>, vector<32x128xf32>, vector<32x128xf32> -> vector<32x128xf32>
    %8 = arith.addf %6, %7 : vector<32x128xf32>
    %c0_8 = arith.constant 0 : index
    %c0_9 = arith.constant 0 : index
    %c0_10 = arith.constant 0 : index
    %9 = vector.load %arg4[%c0_8, %c0_9, %c0_10] : memref<3x128x256xf32, #tpu.memory_space<vmem>>, vector<1x128x256xf32>
    %10 = vector.shape_cast %9 : vector<1x128x256xf32> to vector<128x256xf32>
    %cst_11 = arith.constant dense<0.000000e+00> : vector<32x256xf32>
    %11 = tpu.matmul %8, %10, %cst_11 {dimension_numbers = #tpu.dot_dimension_numbers<[1], [0], [0], [1], [0, 0, 1, 1], [], []>} : vector<32x128xf32>, vector<128x256xf32>, vector<32x256xf32> -> vector<32x256xf32>
    %c0_12 = arith.constant 0 : index
    %c0_13 = arith.constant 0 : index
    %c0_14 = arith.constant 0 : index
    %12 = vector.load %arg5[%c0_12, %c0_13, %c0_14] : memref<3x1x256xf32, #tpu.memory_space<vmem>>, vector<1x1x256xf32>
    %13 = vector.shape_cast %12 : vector<1x1x256xf32> to vector<1x256xf32>
    %c0_15 = arith.constant 0 : index
    %c0_16 = arith.constant 0 : index
    %c0_17 = arith.constant 0 : index
    %14 = vector.load %arg6[%c0_15, %c0_16, %c0_17] : memref<3x1x256xf32, #tpu.memory_space<vmem>>, vector<1x1x256xf32>
    %15 = vector.shape_cast %14 : vector<1x1x256xf32> to vector<1x256xf32>
    %cst_18 = arith.constant dense<0.000000e+00> : vector<256xf32>
    %16 = vector.multi_reduction <add>, %11, %cst_18 [0] : vector<32x256xf32> to vector<256xf32>
    %17 = vector.shape_cast %16 : vector<256xf32> to vector<1x256xf32>
    %cst_19 = arith.constant 3.125000e-02 : f32
    %18 = vector.broadcast %cst_19 : f32 to vector<1x256xf32>
    %19 = arith.mulf %17, %18 : vector<1x256xf32>
    %20 = arith.mulf %11, %11 : vector<32x256xf32>
    %cst_20 = arith.constant dense<0.000000e+00> : vector<256xf32>
    %21 = vector.multi_reduction <add>, %20, %cst_20 [0] : vector<32x256xf32> to vector<256xf32>
    %22 = vector.shape_cast %21 : vector<256xf32> to vector<1x256xf32>
    %cst_21 = arith.constant 3.125000e-02 : f32
    %23 = vector.broadcast %cst_21 : f32 to vector<1x256xf32>
    %24 = arith.mulf %22, %23 : vector<1x256xf32>
    %25 = arith.mulf %19, %19 : vector<1x256xf32>
    %26 = arith.subf %24, %25 : vector<1x256xf32>
    %cst_22 = arith.constant 0.000000e+00 : f32
    %27 = vector.broadcast %cst_22 : f32 to vector<1x256xf32>
    %28 = arith.maximumf %26, %27 : vector<1x256xf32>
    %cst_23 = arith.constant 9.99999974E-6 : f32
    %29 = vector.broadcast %cst_23 : f32 to vector<1x256xf32>
    %30 = arith.addf %28, %29 : vector<1x256xf32>
    %31 = math.rsqrt %30 : vector<1x256xf32>
    %32 = arith.mulf %13, %31 : vector<1x256xf32>
    %33 = arith.mulf %19, %32 : vector<1x256xf32>
    %34 = arith.subf %15, %33 : vector<1x256xf32>
    %35 = vector.broadcast %32 : vector<1x256xf32> to vector<32x256xf32>
    %36 = arith.mulf %11, %35 : vector<32x256xf32>
    %37 = vector.broadcast %34 : vector<1x256xf32> to vector<32x256xf32>
    %38 = arith.addf %36, %37 : vector<32x256xf32>
    %cst_24 = arith.constant 0.000000e+00 : f32
    %39 = vector.broadcast %cst_24 : f32 to vector<32x256xf32>
    %40 = arith.maximumf %38, %39 : vector<32x256xf32>
    %c0_25 = arith.constant 0 : index
    %c0_26 = arith.constant 0 : index
    %c0_27 = arith.constant 0 : index
    %41 = vector.load %arg7[%c0_25, %c0_26, %c0_27] : memref<3x256x128xf32, #tpu.memory_space<vmem>>, vector<1x256x128xf32>
    %42 = vector.shape_cast %41 : vector<1x256x128xf32> to vector<256x128xf32>
    %cst_28 = arith.constant dense<0.000000e+00> : vector<32x128xf32>
    %43 = tpu.matmul %40, %42, %cst_28 {dimension_numbers = #tpu.dot_dimension_numbers<[1], [0], [0], [1], [0, 0, 1, 1], [], []>} : vector<32x256xf32>, vector<256x128xf32>, vector<32x128xf32> -> vector<32x128xf32>
    %c0_29 = arith.constant 0 : index
    %c0_30 = arith.constant 0 : index
    %c0_31 = arith.constant 0 : index
    %44 = vector.load %arg8[%c0_29, %c0_30, %c0_31] : memref<3x1x128xf32, #tpu.memory_space<vmem>>, vector<1x1x128xf32>
    %45 = vector.shape_cast %44 : vector<1x1x128xf32> to vector<1x128xf32>
    %c0_32 = arith.constant 0 : index
    %c0_33 = arith.constant 0 : index
    %c0_34 = arith.constant 0 : index
    %46 = vector.load %arg9[%c0_32, %c0_33, %c0_34] : memref<3x1x128xf32, #tpu.memory_space<vmem>>, vector<1x1x128xf32>
    %47 = vector.shape_cast %46 : vector<1x1x128xf32> to vector<1x128xf32>
    %cst_35 = arith.constant dense<0.000000e+00> : vector<128xf32>
    %48 = vector.multi_reduction <add>, %43, %cst_35 [0] : vector<32x128xf32> to vector<128xf32>
    %49 = vector.shape_cast %48 : vector<128xf32> to vector<1x128xf32>
    %cst_36 = arith.constant 3.125000e-02 : f32
    %50 = vector.broadcast %cst_36 : f32 to vector<1x128xf32>
    %51 = arith.mulf %49, %50 : vector<1x128xf32>
    %52 = arith.mulf %43, %43 : vector<32x128xf32>
    %cst_37 = arith.constant dense<0.000000e+00> : vector<128xf32>
    %53 = vector.multi_reduction <add>, %52, %cst_37 [0] : vector<32x128xf32> to vector<128xf32>
    %54 = vector.shape_cast %53 : vector<128xf32> to vector<1x128xf32>
    %cst_38 = arith.constant 3.125000e-02 : f32
    %55 = vector.broadcast %cst_38 : f32 to vector<1x128xf32>
    %56 = arith.mulf %54, %55 : vector<1x128xf32>
    %57 = arith.mulf %51, %51 : vector<1x128xf32>
    %58 = arith.subf %56, %57 : vector<1x128xf32>
    %cst_39 = arith.constant 0.000000e+00 : f32
    %59 = vector.broadcast %cst_39 : f32 to vector<1x128xf32>
    %60 = arith.maximumf %58, %59 : vector<1x128xf32>
    %cst_40 = arith.constant 9.99999974E-6 : f32
    %61 = vector.broadcast %cst_40 : f32 to vector<1x128xf32>
    %62 = arith.addf %60, %61 : vector<1x128xf32>
    %63 = math.rsqrt %62 : vector<1x128xf32>
    %64 = arith.mulf %45, %63 : vector<1x128xf32>
    %65 = arith.mulf %51, %64 : vector<1x128xf32>
    %66 = arith.subf %47, %65 : vector<1x128xf32>
    %67 = vector.broadcast %64 : vector<1x128xf32> to vector<32x128xf32>
    %68 = arith.mulf %43, %67 : vector<32x128xf32>
    %69 = vector.broadcast %66 : vector<1x128xf32> to vector<32x128xf32>
    %70 = arith.addf %68, %69 : vector<32x128xf32>
    %cst_41 = arith.constant 0.000000e+00 : f32
    %71 = vector.broadcast %cst_41 : f32 to vector<32x128xf32>
    %72 = arith.maximumf %70, %71 : vector<32x128xf32>
    %cst_42 = arith.constant dense<0.000000e+00> : vector<32x128xf32>
    %73 = tpu.matmul %0, %72, %cst_42 {dimension_numbers = #tpu.dot_dimension_numbers<[1], [0], [0], [1], [0, 0, 1, 1], [], []>} : vector<32x32xf32>, vector<32x128xf32>, vector<32x128xf32> -> vector<32x128xf32>
    %74 = arith.addf %72, %73 : vector<32x128xf32>
    %c1 = arith.constant 1 : index
    %c0_43 = arith.constant 0 : index
    %c0_44 = arith.constant 0 : index
    %75 = vector.load %arg4[%c1, %c0_43, %c0_44] : memref<3x128x256xf32, #tpu.memory_space<vmem>>, vector<1x128x256xf32>
    %76 = vector.shape_cast %75 : vector<1x128x256xf32> to vector<128x256xf32>
    %cst_45 = arith.constant dense<0.000000e+00> : vector<32x256xf32>
    %77 = tpu.matmul %74, %76, %cst_45 {dimension_numbers = #tpu.dot_dimension_numbers<[1], [0], [0], [1], [0, 0, 1, 1], [], []>} : vector<32x128xf32>, vector<128x256xf32>, vector<32x256xf32> -> vector<32x256xf32>
    %c1_46 = arith.constant 1 : index
    %c0_47 = arith.constant 0 : index
    %c0_48 = arith.constant 0 : index
    %78 = vector.load %arg5[%c1_46, %c0_47, %c0_48] : memref<3x1x256xf32, #tpu.memory_space<vmem>>, vector<1x1x256xf32>
    %79 = vector.shape_cast %78 : vector<1x1x256xf32> to vector<1x256xf32>
    %c1_49 = arith.constant 1 : index
    %c0_50 = arith.constant 0 : index
    %c0_51 = arith.constant 0 : index
    %80 = vector.load %arg6[%c1_49, %c0_50, %c0_51] : memref<3x1x256xf32, #tpu.memory_space<vmem>>, vector<1x1x256xf32>
    %81 = vector.shape_cast %80 : vector<1x1x256xf32> to vector<1x256xf32>
    %cst_52 = arith.constant dense<0.000000e+00> : vector<256xf32>
    %82 = vector.multi_reduction <add>, %77, %cst_52 [0] : vector<32x256xf32> to vector<256xf32>
    %83 = vector.shape_cast %82 : vector<256xf32> to vector<1x256xf32>
    %cst_53 = arith.constant 3.125000e-02 : f32
    %84 = vector.broadcast %cst_53 : f32 to vector<1x256xf32>
    %85 = arith.mulf %83, %84 : vector<1x256xf32>
    %86 = arith.mulf %77, %77 : vector<32x256xf32>
    %cst_54 = arith.constant dense<0.000000e+00> : vector<256xf32>
    %87 = vector.multi_reduction <add>, %86, %cst_54 [0] : vector<32x256xf32> to vector<256xf32>
    %88 = vector.shape_cast %87 : vector<256xf32> to vector<1x256xf32>
    %cst_55 = arith.constant 3.125000e-02 : f32
    %89 = vector.broadcast %cst_55 : f32 to vector<1x256xf32>
    %90 = arith.mulf %88, %89 : vector<1x256xf32>
    %91 = arith.mulf %85, %85 : vector<1x256xf32>
    %92 = arith.subf %90, %91 : vector<1x256xf32>
    %cst_56 = arith.constant 0.000000e+00 : f32
    %93 = vector.broadcast %cst_56 : f32 to vector<1x256xf32>
    %94 = arith.maximumf %92, %93 : vector<1x256xf32>
    %cst_57 = arith.constant 9.99999974E-6 : f32
    %95 = vector.broadcast %cst_57 : f32 to vector<1x256xf32>
    %96 = arith.addf %94, %95 : vector<1x256xf32>
    %97 = math.rsqrt %96 : vector<1x256xf32>
    %98 = arith.mulf %79, %97 : vector<1x256xf32>
    %99 = arith.mulf %85, %98 : vector<1x256xf32>
    %100 = arith.subf %81, %99 : vector<1x256xf32>
    %101 = vector.broadcast %98 : vector<1x256xf32> to vector<32x256xf32>
    %102 = arith.mulf %77, %101 : vector<32x256xf32>
    %103 = vector.broadcast %100 : vector<1x256xf32> to vector<32x256xf32>
    %104 = arith.addf %102, %103 : vector<32x256xf32>
    %cst_58 = arith.constant 0.000000e+00 : f32
    %105 = vector.broadcast %cst_58 : f32 to vector<32x256xf32>
    %106 = arith.maximumf %104, %105 : vector<32x256xf32>
    %c1_59 = arith.constant 1 : index
    %c0_60 = arith.constant 0 : index
    %c0_61 = arith.constant 0 : index
    %107 = vector.load %arg7[%c1_59, %c0_60, %c0_61] : memref<3x256x128xf32, #tpu.memory_space<vmem>>, vector<1x256x128xf32>
    %108 = vector.shape_cast %107 : vector<1x256x128xf32> to vector<256x128xf32>
    %cst_62 = arith.constant dense<0.000000e+00> : vector<32x128xf32>
    %109 = tpu.matmul %106, %108, %cst_62 {dimension_numbers = #tpu.dot_dimension_numbers<[1], [0], [0], [1], [0, 0, 1, 1], [], []>} : vector<32x256xf32>, vector<256x128xf32>, vector<32x128xf32> -> vector<32x128xf32>
    %c1_63 = arith.constant 1 : index
    %c0_64 = arith.constant 0 : index
    %c0_65 = arith.constant 0 : index
    %110 = vector.load %arg8[%c1_63, %c0_64, %c0_65] : memref<3x1x128xf32, #tpu.memory_space<vmem>>, vector<1x1x128xf32>
    %111 = vector.shape_cast %110 : vector<1x1x128xf32> to vector<1x128xf32>
    %c1_66 = arith.constant 1 : index
    %c0_67 = arith.constant 0 : index
    %c0_68 = arith.constant 0 : index
    %112 = vector.load %arg9[%c1_66, %c0_67, %c0_68] : memref<3x1x128xf32, #tpu.memory_space<vmem>>, vector<1x1x128xf32>
    %113 = vector.shape_cast %112 : vector<1x1x128xf32> to vector<1x128xf32>
    %cst_69 = arith.constant dense<0.000000e+00> : vector<128xf32>
    %114 = vector.multi_reduction <add>, %109, %cst_69 [0] : vector<32x128xf32> to vector<128xf32>
    %115 = vector.shape_cast %114 : vector<128xf32> to vector<1x128xf32>
    %cst_70 = arith.constant 3.125000e-02 : f32
    %116 = vector.broadcast %cst_70 : f32 to vector<1x128xf32>
    %117 = arith.mulf %115, %116 : vector<1x128xf32>
    %118 = arith.mulf %109, %109 : vector<32x128xf32>
    %cst_71 = arith.constant dense<0.000000e+00> : vector<128xf32>
    %119 = vector.multi_reduction <add>, %118, %cst_71 [0] : vector<32x128xf32> to vector<128xf32>
    %120 = vector.shape_cast %119 : vector<128xf32> to vector<1x128xf32>
    %cst_72 = arith.constant 3.125000e-02 : f32
    %121 = vector.broadcast %cst_72 : f32 to vector<1x128xf32>
    %122 = arith.mulf %120, %121 : vector<1x128xf32>
    %123 = arith.mulf %117, %117 : vector<1x128xf32>
    %124 = arith.subf %122, %123 : vector<1x128xf32>
    %cst_73 = arith.constant 0.000000e+00 : f32
    %125 = vector.broadcast %cst_73 : f32 to vector<1x128xf32>
    %126 = arith.maximumf %124, %125 : vector<1x128xf32>
    %cst_74 = arith.constant 9.99999974E-6 : f32
    %127 = vector.broadcast %cst_74 : f32 to vector<1x128xf32>
    %128 = arith.addf %126, %127 : vector<1x128xf32>
    %129 = math.rsqrt %128 : vector<1x128xf32>
    %130 = arith.mulf %111, %129 : vector<1x128xf32>
    %131 = arith.mulf %117, %130 : vector<1x128xf32>
    %132 = arith.subf %113, %131 : vector<1x128xf32>
    %133 = vector.broadcast %130 : vector<1x128xf32> to vector<32x128xf32>
    %134 = arith.mulf %109, %133 : vector<32x128xf32>
    %135 = vector.broadcast %132 : vector<1x128xf32> to vector<32x128xf32>
    %136 = arith.addf %134, %135 : vector<32x128xf32>
    %cst_75 = arith.constant 0.000000e+00 : f32
    %137 = vector.broadcast %cst_75 : f32 to vector<32x128xf32>
    %138 = arith.maximumf %136, %137 : vector<32x128xf32>
    %cst_76 = arith.constant dense<0.000000e+00> : vector<32x128xf32>
    %139 = tpu.matmul %0, %138, %cst_76 {dimension_numbers = #tpu.dot_dimension_numbers<[1], [0], [0], [1], [0, 0, 1, 1], [], []>} : vector<32x32xf32>, vector<32x128xf32>, vector<32x128xf32> -> vector<32x128xf32>
    %140 = arith.addf %138, %139 : vector<32x128xf32>
    %c2 = arith.constant 2 : index
    %c0_77 = arith.constant 0 : index
    %c0_78 = arith.constant 0 : index
    %141 = vector.load %arg4[%c2, %c0_77, %c0_78] : memref<3x128x256xf32, #tpu.memory_space<vmem>>, vector<1x128x256xf32>
    %142 = vector.shape_cast %141 : vector<1x128x256xf32> to vector<128x256xf32>
    %cst_79 = arith.constant dense<0.000000e+00> : vector<32x256xf32>
    %143 = tpu.matmul %140, %142, %cst_79 {dimension_numbers = #tpu.dot_dimension_numbers<[1], [0], [0], [1], [0, 0, 1, 1], [], []>} : vector<32x128xf32>, vector<128x256xf32>, vector<32x256xf32> -> vector<32x256xf32>
    %c2_80 = arith.constant 2 : index
    %c0_81 = arith.constant 0 : index
    %c0_82 = arith.constant 0 : index
    %144 = vector.load %arg5[%c2_80, %c0_81, %c0_82] : memref<3x1x256xf32, #tpu.memory_space<vmem>>, vector<1x1x256xf32>
    %145 = vector.shape_cast %144 : vector<1x1x256xf32> to vector<1x256xf32>
    %c2_83 = arith.constant 2 : index
    %c0_84 = arith.constant 0 : index
    %c0_85 = arith.constant 0 : index
    %146 = vector.load %arg6[%c2_83, %c0_84, %c0_85] : memref<3x1x256xf32, #tpu.memory_space<vmem>>, vector<1x1x256xf32>
    %147 = vector.shape_cast %146 : vector<1x1x256xf32> to vector<1x256xf32>
    %cst_86 = arith.constant dense<0.000000e+00> : vector<256xf32>
    %148 = vector.multi_reduction <add>, %143, %cst_86 [0] : vector<32x256xf32> to vector<256xf32>
    %149 = vector.shape_cast %148 : vector<256xf32> to vector<1x256xf32>
    %cst_87 = arith.constant 3.125000e-02 : f32
    %150 = vector.broadcast %cst_87 : f32 to vector<1x256xf32>
    %151 = arith.mulf %149, %150 : vector<1x256xf32>
    %152 = arith.mulf %143, %143 : vector<32x256xf32>
    %cst_88 = arith.constant dense<0.000000e+00> : vector<256xf32>
    %153 = vector.multi_reduction <add>, %152, %cst_88 [0] : vector<32x256xf32> to vector<256xf32>
    %154 = vector.shape_cast %153 : vector<256xf32> to vector<1x256xf32>
    %cst_89 = arith.constant 3.125000e-02 : f32
    %155 = vector.broadcast %cst_89 : f32 to vector<1x256xf32>
    %156 = arith.mulf %154, %155 : vector<1x256xf32>
    %157 = arith.mulf %151, %151 : vector<1x256xf32>
    %158 = arith.subf %156, %157 : vector<1x256xf32>
    %cst_90 = arith.constant 0.000000e+00 : f32
    %159 = vector.broadcast %cst_90 : f32 to vector<1x256xf32>
    %160 = arith.maximumf %158, %159 : vector<1x256xf32>
    %cst_91 = arith.constant 9.99999974E-6 : f32
    %161 = vector.broadcast %cst_91 : f32 to vector<1x256xf32>
    %162 = arith.addf %160, %161 : vector<1x256xf32>
    %163 = math.rsqrt %162 : vector<1x256xf32>
    %164 = arith.mulf %145, %163 : vector<1x256xf32>
    %165 = arith.mulf %151, %164 : vector<1x256xf32>
    %166 = arith.subf %147, %165 : vector<1x256xf32>
    %167 = vector.broadcast %164 : vector<1x256xf32> to vector<32x256xf32>
    %168 = arith.mulf %143, %167 : vector<32x256xf32>
    %169 = vector.broadcast %166 : vector<1x256xf32> to vector<32x256xf32>
    %170 = arith.addf %168, %169 : vector<32x256xf32>
    %cst_92 = arith.constant 0.000000e+00 : f32
    %171 = vector.broadcast %cst_92 : f32 to vector<32x256xf32>
    %172 = arith.maximumf %170, %171 : vector<32x256xf32>
    %c2_93 = arith.constant 2 : index
    %c0_94 = arith.constant 0 : index
    %c0_95 = arith.constant 0 : index
    %173 = vector.load %arg7[%c2_93, %c0_94, %c0_95] : memref<3x256x128xf32, #tpu.memory_space<vmem>>, vector<1x256x128xf32>
    %174 = vector.shape_cast %173 : vector<1x256x128xf32> to vector<256x128xf32>
    %cst_96 = arith.constant dense<0.000000e+00> : vector<32x128xf32>
    %175 = tpu.matmul %172, %174, %cst_96 {dimension_numbers = #tpu.dot_dimension_numbers<[1], [0], [0], [1], [0, 0, 1, 1], [], []>} : vector<32x256xf32>, vector<256x128xf32>, vector<32x128xf32> -> vector<32x128xf32>
    %c2_97 = arith.constant 2 : index
    %c0_98 = arith.constant 0 : index
    %c0_99 = arith.constant 0 : index
    %176 = vector.load %arg8[%c2_97, %c0_98, %c0_99] : memref<3x1x128xf32, #tpu.memory_space<vmem>>, vector<1x1x128xf32>
    %177 = vector.shape_cast %176 : vector<1x1x128xf32> to vector<1x128xf32>
    %c2_100 = arith.constant 2 : index
    %c0_101 = arith.constant 0 : index
    %c0_102 = arith.constant 0 : index
    %178 = vector.load %arg9[%c2_100, %c0_101, %c0_102] : memref<3x1x128xf32, #tpu.memory_space<vmem>>, vector<1x1x128xf32>
    %179 = vector.shape_cast %178 : vector<1x1x128xf32> to vector<1x128xf32>
    %cst_103 = arith.constant dense<0.000000e+00> : vector<128xf32>
    %180 = vector.multi_reduction <add>, %175, %cst_103 [0] : vector<32x128xf32> to vector<128xf32>
    %181 = vector.shape_cast %180 : vector<128xf32> to vector<1x128xf32>
    %cst_104 = arith.constant 3.125000e-02 : f32
    %182 = vector.broadcast %cst_104 : f32 to vector<1x128xf32>
    %183 = arith.mulf %181, %182 : vector<1x128xf32>
    %184 = arith.mulf %175, %175 : vector<32x128xf32>
    %cst_105 = arith.constant dense<0.000000e+00> : vector<128xf32>
    %185 = vector.multi_reduction <add>, %184, %cst_105 [0] : vector<32x128xf32> to vector<128xf32>
    %186 = vector.shape_cast %185 : vector<128xf32> to vector<1x128xf32>
    %cst_106 = arith.constant 3.125000e-02 : f32
    %187 = vector.broadcast %cst_106 : f32 to vector<1x128xf32>
    %188 = arith.mulf %186, %187 : vector<1x128xf32>
    %189 = arith.mulf %183, %183 : vector<1x128xf32>
    %190 = arith.subf %188, %189 : vector<1x128xf32>
    %cst_107 = arith.constant 0.000000e+00 : f32
    %191 = vector.broadcast %cst_107 : f32 to vector<1x128xf32>
    %192 = arith.maximumf %190, %191 : vector<1x128xf32>
    %cst_108 = arith.constant 9.99999974E-6 : f32
    %193 = vector.broadcast %cst_108 : f32 to vector<1x128xf32>
    %194 = arith.addf %192, %193 : vector<1x128xf32>
    %195 = math.rsqrt %194 : vector<1x128xf32>
    %196 = arith.mulf %177, %195 : vector<1x128xf32>
    %197 = arith.mulf %183, %196 : vector<1x128xf32>
    %198 = arith.subf %179, %197 : vector<1x128xf32>
    %199 = vector.broadcast %196 : vector<1x128xf32> to vector<32x128xf32>
    %200 = arith.mulf %175, %199 : vector<32x128xf32>
    %201 = vector.broadcast %198 : vector<1x128xf32> to vector<32x128xf32>
    %202 = arith.addf %200, %201 : vector<32x128xf32>
    %c0_109 = arith.constant 0 : index
    %c0_110 = arith.constant 0 : index
    %203 = vector.load %arg15[%c0_109, %c0_110] : memref<32x128xf32, #tpu.memory_space<vmem>>, vector<32x128xf32>
    tpu.vector_store %arg15[%c0_109, %c0_110], %202 {strides = array<i32>} : memref<32x128xf32, #tpu.memory_space<vmem>>, vector<32x128xf32>,
    %c0_111 = arith.constant 0 : index
    %c0_112 = arith.constant 0 : index
    %204 = vector.load %arg10[%c0_111, %c0_112] : memref<128x128xf32, #tpu.memory_space<vmem>>, vector<128x128xf32>
    %cst_113 = arith.constant dense<0.000000e+00> : vector<32x128xf32>
    %205 = tpu.matmul %202, %204, %cst_113 {dimension_numbers = #tpu.dot_dimension_numbers<[1], [0], [0], [1], [0, 0, 1, 1], [], []>} : vector<32x128xf32>, vector<128x128xf32>, vector<32x128xf32> -> vector<32x128xf32>
    %c0_114 = arith.constant 0 : index
    %c0_115 = arith.constant 0 : index
    %206 = vector.load %arg11[%c0_114, %c0_115] : memref<1x128xf32, #tpu.memory_space<vmem>>, vector<1x128xf32>
    %207 = vector.broadcast %206 : vector<1x128xf32> to vector<32x128xf32>
    %208 = arith.addf %205, %207 : vector<32x128xf32>
    %cst_116 = arith.constant 0.000000e+00 : f32
    %209 = vector.broadcast %cst_116 : f32 to vector<32x128xf32>
    %210 = arith.maximumf %208, %209 : vector<32x128xf32>
    %c0_117 = arith.constant 0 : index
    %c0_118 = arith.constant 0 : index
    %211 = vector.load %arg12[%c0_117, %c0_118] : memref<128x128xf32, #tpu.memory_space<vmem>>, vector<128x128xf32>
    %cst_119 = arith.constant dense<0.000000e+00> : vector<32x128xf32>
    %212 = tpu.matmul %210, %211, %cst_119 {dimension_numbers = #tpu.dot_dimension_numbers<[1], [0], [0], [1], [0, 0, 1, 1], [], []>} : vector<32x128xf32>, vector<128x128xf32>, vector<32x128xf32> -> vector<32x128xf32>
    %c0_120 = arith.constant 0 : index
    %c0_121 = arith.constant 0 : index
    %213 = vector.load %arg13[%c0_120, %c0_121] : memref<1x128xf32, #tpu.memory_space<vmem>>, vector<1x128xf32>
    %214 = vector.broadcast %213 : vector<1x128xf32> to vector<32x128xf32>
    %215 = arith.addf %212, %214 : vector<32x128xf32>
    %c0_122 = arith.constant 0 : index
    %c0_123 = arith.constant 0 : index
    %216 = vector.load %arg14[%c0_122, %c0_123] : memref<32x128xf32, #tpu.memory_space<vmem>>, vector<32x128xf32>
    tpu.vector_store %arg14[%c0_122, %c0_123], %215 {strides = array<i32>} : memref<32x128xf32, #tpu.memory_space<vmem>>, vector<32x128xf32>,
    return
  }
}

</mosaic_0001>

<llo_original>
// kernel: tpu_custom_call.1
$region0: #{tpu_custom_call.1}
  #allocation0 [shape = 'u32[]', space=smem, size = 0x4, offset = 0x4, fixed_abs, tag = 'smem constant byte address 0x4 - core index']
  #allocation1 [shape = 'u32[144,128]{1,0:T(1,128)}', space=vmem, size = 0x12000, scoped, tag = 'internal scratch']
  %s0 = inlined_call_operand.vmem [shape: f32[32,16], index: 0, kind: input, shape index: {}]
  %s1 = inlined_call_operand.vmem [shape: f32[32,32], index: 1, kind: input, shape index: {}]
  %s2 = inlined_call_operand.vmem [shape: f32[16,128], index: 2, kind: input, shape index: {}]
  %s3 = inlined_call_operand.hbm [shape: f32[1,128], index: 3, kind: input, shape index: {}]
  %s4 = inlined_call_operand.hbm [shape: f32[3,128,256], index: 4, kind: input, shape index: {}]
  %s5 = inlined_call_operand.vmem [shape: f32[3,1,256], index: 5, kind: input, shape index: {}]
  %s6 = inlined_call_operand.hbm [shape: f32[3,1,256], index: 6, kind: input, shape index: {}]
  %s7 = inlined_call_operand.hbm [shape: f32[3,256,128], index: 7, kind: input, shape index: {}]
  %s8 = inlined_call_operand.vmem [shape: f32[3,1,128], index: 8, kind: input, shape index: {}]
  %s9 = inlined_call_operand.vmem [shape: f32[3,1,128], index: 9, kind: input, shape index: {}]
  %s10 = inlined_call_operand.hbm [shape: f32[128,128], index: 10, kind: input, shape index: {}]
  %s11 = inlined_call_operand.vmem [shape: f32[1,128], index: 11, kind: input, shape index: {}]
  %s12 = inlined_call_operand.hbm [shape: f32[128,128], index: 12, kind: input, shape index: {}]
  %s13 = inlined_call_operand.vmem [shape: f32[1,128], index: 13, kind: input, shape index: {}]
  %s14 = inlined_call_operand.hbm [shape: f32[32,128], index: 14, kind: output, shape index: {0}]
  %s15 = inlined_call_operand.hbm [shape: f32[32,128], index: 15, kind: output, shape index: {1}]
  %16 = xla_tuple %s14, %s15
  %s17 = sld [smem:[#allocation0]]
  $region98: #{tpu_custom_call.1} parent=0
    _
  %s19 = ssub.s32 1, %s17
  %s20 = scalar_select 0, %s19, %s17
  $region1: #{tpu_custom_call.1} parent=0
    #allocation2 [shape = 'u8[512]{0}', space=vmem, size = 0x400, scoped, tag = 'input window, operand 3, single buffered']
    #allocation3 [shape = 's32[1]{0}', space=sflag, size = 0x4, scoped, tag = 'scoped memory for tpu_custom_call.1']
    #allocation4 [shape = 's32[1]{0}', space=sflag, size = 0x4, scoped, tag = 'scoped memory for tpu_custom_call.1']
    #allocation5 [shape = 'u8[393216]{0}', space=vmem, size = 0x60000, scoped, tag = 'input window, operand 4, single buffered']
    #allocation6 [shape = 's32[1]{0}', space=sflag, size = 0x4, scoped, tag = 'scoped memory for tpu_custom_call.1']
    #allocation7 [shape = 'u8[3072]{0}', space=vmem, size = 0xc00, scoped, tag = 'input window, operand 6, single buffered']
    #allocation8 [shape = 'u8[393216]{0}', space=vmem, size = 0x60000, scoped, tag = 'input window, operand 7, single buffered']
    #allocation9 [shape = 's32[1]{0}', space=sflag, size = 0x4, scoped, tag = 'scoped memory for tpu_custom_call.1']
    #allocation10 [shape = 'u8[65536]{0}', space=vmem, size = 0x10000, scoped, tag = 'input window, operand 10, single buffered']
    #allocation11 [shape = 'u8[65536]{0}', space=vmem, size = 0x10000, scoped, tag = 'input window, operand 12, single buffered']
    #allocation12 [shape = 's32[1]{0}', space=sflag, size = 0x4, scoped, tag = 'scoped memory for tpu_custom_call.1']
    #allocation13 [shape = 'u8[16384]{0}', space=vmem, size = 0x4000, scoped, tag = 'output window, operand 0, single buffered']
    #allocation14 [shape = 'u8[16384]{0}', space=vmem, size = 0x4000, scoped, tag = 'output window, operand 1, single buffered']
    #allocation15 [shape = 's32[1]{0}', space=sflag, size = 0x4, scoped, tag = 'scoped memory for tpu_custom_call.1']
    %21 = vsyncpa [#allocation3], 0
    %22 = vsyncpa [#allocation6], 0
    %23 = vsyncpa [#allocation9], 0
    %24 = vsyncpa [#allocation12], 0
    %25 = vsyncpa [#allocation4], 0
    %26 = vsyncpa [#allocation15], 0
    // Predicated region
    $region2: #{tpu_custom_call.1} parent=1 // pred_check
      _
    $region3: #{tpu_custom_call.1} parent=1 // pred_check_branch
      %28 = sbr.rel (0) target = $region5
    $region4: #{tpu_custom_call.1} parent=1 // pred_region
      _
    $region5: #{tpu_custom_call.1} parent=1 // pred_fallthru
      _
    // Predicated region
    $region6: #{tpu_custom_call.1} parent=1 // pred_check
      _
    $region7: #{tpu_custom_call.1} parent=1 // pred_check_branch
      %30 = sbr.rel (0) target = $region9
    $region8: #{tpu_custom_call.1} parent=1 // pred_region
      _
    $region9: #{tpu_custom_call.1} parent=1 // pred_fallthru
      _
    // Predicated region
    $region10: #{tpu_custom_call.1} parent=1 // pred_check
      _
    $region11: #{tpu_custom_call.1} parent=1 // pred_check_branch
      %32 = sbr.rel (0) target = $region13
    $region12: #{tpu_custom_call.1} parent=1 // pred_region
      _
    $region13: #{tpu_custom_call.1} parent=1 // pred_fallthru
      _
    // Predicated region
    $region14: #{tpu_custom_call.1} parent=1 // pred_check
      _
    $region15: #{tpu_custom_call.1} parent=1 // pred_check_branch
      %34 = sbr.rel (0) target = $region17
    $region16: #{tpu_custom_call.1} parent=1 // pred_region
      %s36 = ssub.s32 16, 16
      %37 = vsyncadd [#allocation3], %s36
      %s39 = sshll.u32 [#allocation2], 4
      %s40 = int_to_ptr.vmem [resolvable:$true] %s39
      %42 = dma.hbm_to_vmem [thread:$0]  %s3, 16, %s40, [#allocation3]
    $region17: #{tpu_custom_call.1} parent=1 // pred_fallthru
      _
    // Predicated region
    $region18: #{tpu_custom_call.1} parent=1 // pred_check
      _
    $region19: #{tpu_custom_call.1} parent=1 // pred_check_branch
      %44 = sbr.rel (0) target = $region21
    $region20: #{tpu_custom_call.1} parent=1 // pred_region
      %s46 = ssub.s32 12288, 12288
      %47 = vsyncadd [#allocation6], %s46
      %s48 = sshll.u32 [#allocation5], 4
      %s49 = int_to_ptr.vmem [resolvable:$true] %s48
      %54 = dma.hbm_to_vmem [thread:$0]  %s4, 12288, %s49, [#allocation6], 256, 256, 16
    $region21: #{tpu_custom_call.1} parent=1 // pred_fallthru
      _
    // Predicated region
    $region22: #{tpu_custom_call.1} parent=1 // pred_check
      _
    $region23: #{tpu_custom_call.1} parent=1 // pred_check_branch
      %56 = sbr.rel (0) target = $region25
    $region24: #{tpu_custom_call.1} parent=1 // pred_region
      _
    $region25: #{tpu_custom_call.1} parent=1 // pred_fallthru
      _
    // Predicated region
    $region26: #{tpu_custom_call.1} parent=1 // pred_check
      _
    $region27: #{tpu_custom_call.1} parent=1 // pred_check_branch
      %58 = sbr.rel (0) target = $region29
    $region28: #{tpu_custom_call.1} parent=1 // pred_region
      %s60 = ssub.s32 96, 96
      %61 = vsyncadd [#allocation6], %s60
      %s62 = sshll.u32 [#allocation7], 4
      %s63 = int_to_ptr.vmem [resolvable:$true] %s62
      %68 = dma.hbm_to_vmem [thread:$0]  %s6, 96, %s63, [#allocation6], 32, 32, 2
    $region29: #{tpu_custom_call.1} parent=1 // pred_fallthru
      _
    // Predicated region
    $region30: #{tpu_custom_call.1} parent=1 // pred_check
      _
    $region31: #{tpu_custom_call.1} parent=1 // pred_check_branch
      %70 = sbr.rel (0) target = $region33
    $region32: #{tpu_custom_call.1} parent=1 // pred_region
      %s72 = ssub.s32 12288, 12288
      %73 = vsyncadd [#allocation9], %s72
      %s74 = sshll.u32 [#allocation8], 4
      %s75 = int_to_ptr.vmem [resolvable:$true] %s74
      %80 = dma.hbm_to_vmem [thread:$0]  %s7, 12288, %s75, [#allocation9], 128, 128, 8
    $region33: #{tpu_custom_call.1} parent=1 // pred_fallthru
      _
    // Predicated region
    $region34: #{tpu_custom_call.1} parent=1 // pred_check
      _
    $region35: #{tpu_custom_call.1} parent=1 // pred_check_branch
      %82 = sbr.rel (0) target = $region37
    $region36: #{tpu_custom_call.1} parent=1 // pred_region
      _
    $region37: #{tpu_custom_call.1} parent=1 // pred_fallthru
      _
    // Predicated region
    $region38: #{tpu_custom_call.1} parent=1 // pred_check
      _
    $region39: #{tpu_custom_call.1} parent=1 // pred_check_branch
      %84 = sbr.rel (0) target = $region41
    $region40: #{tpu_custom_call.1} parent=1 // pred_region
      _
    $region41: #{tpu_custom_call.1} parent=1 // pred_fallthru
      _
    // Predicated region
    $region42: #{tpu_custom_call.1} parent=1 // pred_check
      _
    $region43: #{tpu_custom_call.1} parent=1 // pred_check_branch
      %86 = sbr.rel (0) target = $region45
    $region44: #{tpu_custom_call.1} parent=1 // pred_region
      %s88 = ssub.s32 2048, 2048
      %89 = vsyncadd [#allocation9], %s88
      %s90 = sshll.u32 [#allocation10], 4
      %s91 = int_to_ptr.vmem [resolvable:$true] %s90
      %96 = dma.hbm_to_vmem [thread:$0]  %s10, 2048, %s91, [#allocation9], 128, 128, 8
    $region45: #{tpu_custom_call.1} parent=1 // pred_fallthru
      _
    // Predicated region
    $region46: #{tpu_custom_call.1} parent=1 // pred_check
      _
    $region47: #{tpu_custom_call.1} parent=1 // pred_check_branch
      %98 = sbr.rel (0) target = $region49
    $region48: #{tpu_custom_call.1} parent=1 // pred_region
      _
    $region49: #{tpu_custom_call.1} parent=1 // pred_fallthru
      _
    // Predicated region
    $region50: #{tpu_custom_call.1} parent=1 // pred_check
      _
    $region51: #{tpu_custom_call.1} parent=1 // pred_check_branch
      %100 = sbr.rel (0) target = $region53
    $region52: #{tpu_custom_call.1} parent=1 // pred_region
      %s102 = ssub.s32 2048, 2048
      %103 = vsyncadd [#allocation12], %s102
      %s104 = sshll.u32 [#allocation11], 4
      %s105 = int_to_ptr.vmem [resolvable:$true] %s104
      %110 = dma.hbm_to_vmem [thread:$0]  %s12, 2048, %s105, [#allocation12], 128, 128, 8
    $region53: #{tpu_custom_call.1} parent=1 // pred_fallthru
      _
    // Predicated region
    $region54: #{tpu_custom_call.1} parent=1 // pred_check
      _
    $region55: #{tpu_custom_call.1} parent=1 // pred_check_branch
      %112 = sbr.rel (0) target = $region57
    $region56: #{tpu_custom_call.1} parent=1 // pred_region
      _
    $region57: #{tpu_custom_call.1} parent=1 // pred_fallthru
      _
    // Predicated region
    $region58: #{tpu_custom_call.1} parent=1 // pred_check
      _
    $region59: #{tpu_custom_call.1} parent=1 // pred_check_branch
      %114 = sbr.rel (0) target = $region61
    $region60: #{tpu_custom_call.1} parent=1 // pred_region
      %115 = dma.done [#allocation3], 16
    $region61: #{tpu_custom_call.1} parent=1 // pred_fallthru
      _
    // Predicated region
    $region62: #{tpu_custom_call.1} parent=1 // pred_check
      _
    $region63: #{tpu_custom_call.1} parent=1 // pred_check_branch
      %117 = sbr.rel (0) target = $region65
    $region64: #{tpu_custom_call.1} parent=1 // pred_region
      %118 = dma.done [#allocation6], 12288
    $region65: #{tpu_custom_call.1} parent=1 // pred_fallthru
      _
    // Predicated region
    $region66: #{tpu_custom_call.1} parent=1 // pred_check
      _
    $region67: #{tpu_custom_call.1} parent=1 // pred_check_branch
      %120 = sbr.rel (0) target = $region69
    $region68: #{tpu_custom_call.1} parent=1 // pred_region
      %121 = dma.done [#allocation6], 96
    $region69: #{tpu_custom_call.1} parent=1 // pred_fallthru
      _
    // Predicated region
    $region70: #{tpu_custom_call.1} parent=1 // pred_check
      _
    $region71: #{tpu_custom_call.1} parent=1 // pred_check_branch
      %123 = sbr.rel (0) target = $region73
    $region72: #{tpu_custom_call.1} parent=1 // pred_region
      %124 = dma.done [#allocation9], 12288
    $region73: #{tpu_custom_call.1} parent=1 // pred_fallthru
      _
    // Predicated region
    $region74: #{tpu_custom_call.1} parent=1 // pred_check
      _
    $region75: #{tpu_custom_call.1} parent=1 // pred_check_branch
      %126 = sbr.rel (0) target = $region77
    $region76: #{tpu_custom_call.1} parent=1 // pred_region
      %127 = dma.done [#allocation9], 2048
    $region77: #{tpu_custom_call.1} parent=1 // pred_fallthru
      _
    // Predicated region
    $region78: #{tpu_custom_call.1} parent=1 // pred_check
      _
    $region79: #{tpu_custom_call.1} parent=1 // pred_check_branch
      %129 = sbr.rel (0) target = $region81
    $region80: #{tpu_custom_call.1} parent=1 // pred_region
      %130 = dma.done [#allocation12], 2048
    $region81: #{tpu_custom_call.1} parent=1 // pred_fallthru
      _
    %v131 = vld [vmem:[%s1] sm:$0xff]
    %v132 = vld [vmem:[%s1 + $0x8] sm:$0xff]
    %v133 = vld [vmem:[%s1 + $0x10] sm:$0xff]
    %v134 = vld [vmem:[%s1 + $0x18] sm:$0xff]
    %v135 = vld [vmem:[%s0] sm:$0xff]
    %v136 = vld [vmem:[%s0 + $0x8] sm:$0xff]
    %v137 = vld [vmem:[%s0 + $0x10] sm:$0xff]
    %v138 = vld [vmem:[%s0 + $0x18] sm:$0xff]
    %v139 = vld [vmem:[%s2] sm:$0xff]
    %v140 = vld [vmem:[%s2 + $0x8] sm:$0xff]
    %v141 = vld [vmem:[#allocation2] sm:$0x1]
    %v143 = vlaneseq
    %v144 = vshrl.u32 %v143, 7
    %v145 = vsub.s32 0, %v144
    %v146 = vrot.slane %v141, %v145
    %vm148 = vcmask 130048
    %v150 = vsel %vm148, %v135, 0
    %v153 = vsel %vm148, %v136, 0
    %v156 = vsel %vm148, %v137, 0
    %v159 = vsel %vm148, %v138, 0
    %161 = vmatprep.subr.mxu0 0.0
    %162 = vmatpush1.msra.mxu0 0.0
    %163 = vmatprep.subr.mxu0 0.0
    %164 = vmatpush1.msra.mxu0 0.0
    %165 = vmatprep.subr.mxu0 0.0
    %166 = vmatpush1.msra.mxu0 0.0
    %167 = vmatprep.subr.mxu0 0.0
    %168 = vmatpush1.msra.mxu0 0.0
    %169 = vmatprep.subr.mxu0 0.0
    %170 = vmatpush1.msra.mxu0 0.0
    %171 = vmatprep.subr.mxu0 0.0
    %172 = vmatpush1.msra.mxu0 0.0
    %173 = vmatprep.subr.mxu0 0.0
    %174 = vmatpush1.msra.mxu0 0.0
    %175 = vmatprep.subr.mxu0 0.0
    %176 = vmatpush1.msra.mxu0 0.0
    %177 = vmatprep.subr.mxu0 0.0
    %178 = vmatpush1.msra.mxu0 0.0
    %179 = vmatprep.subr.mxu0 0.0
    %180 = vmatpush1.msra.mxu0 0.0
    %181 = vmatprep.subr.mxu0 0.0
    %182 = vmatpush1.msra.mxu0 0.0
    %183 = vmatprep.subr.mxu0 0.0
    %184 = vmatpush1.msra.mxu0 0.0
    %185 = vmatprep.subr.mxu0 0.0
    %186 = vmatpush1.msra.mxu0 0.0
    %187 = vmatprep.subr.mxu0 0.0
    %188 = vmatpush1.msra.mxu0 0.0
    %189 = vmatprep.subr.mxu0 0.0
    %190 = vmatpush1.msra.mxu0 %v140
    %191 = vmatprep.subr.mxu0 0.0
    %192 = vmatpush1.msra.mxu0 %v139
    %193 = vmatprep.subr.mxu0 0.0
    %194 = vmatpush2.msra.mxu0 0.0
    %195 = vmatprep.subr.mxu0 0.0
    %196 = vmatpush2.msra.mxu0 0.0
    %197 = vmatprep.subr.mxu0 0.0
    %198 = vmatpush2.msra.mxu0 0.0
    %199 = vmatprep.subr.mxu0 0.0
    %200 = vmatpush2.msra.mxu0 0.0
    %201 = vmatprep.subr.mxu0 0.0
    %202 = vmatpush2.msra.mxu0 0.0
    %203 = vmatprep.subr.mxu0 0.0
    %204 = vmatpush2.msra.mxu0 0.0
    %205 = vmatprep.subr.mxu0 0.0
    %206 = vmatpush2.msra.mxu0 0.0
    %207 = vmatprep.subr.mxu0 0.0
    %208 = vmatpush2.msra.mxu0 0.0
    %209 = vmatprep.subr.mxu0 0.0
    %210 = vmatpush2.msra.mxu0 0.0
    %211 = vmatprep.subr.mxu0 0.0
    %212 = vmatpush2.msra.mxu0 0.0
    %213 = vmatprep.subr.mxu0 0.0
    %214 = vmatpush2.msra.mxu0 0.0
    %215 = vmatprep.subr.mxu0 0.0
    %216 = vmatpush2.msra.mxu0 0.0
    %217 = vmatprep.subr.mxu0 0.0
    %218 = vmatpush2.msra.mxu0 0.0
    %219 = vmatprep.subr.mxu0 0.0
    %220 = vmatpush2.msra.mxu0 0.0
    %221 = vmatprep.subr.mxu0 0.0
    %222 = vmatpush2.msra.mxu0 0.0
    %223 = vmatprep.subr.mxu0 0.0
    %224 = vmatpush2.msra.mxu0 0.0
    %225 = vmatprep.mubr.f32.mxu0 0.0
    %226 = vmatmul.mubr.f32.gmra.mxu0 %v150
    %v227 = vpop.f32.mrf.mxu0
    %v228 = vadd.f32 %v146, %v227
    %v229 = vpop.f32.mrf.mxu0
    %230 = vmatprep.mubr.f32.mxu0 0.0
    %231 = vmatmul.mubr.f32.gmra.mxu0 %v153
    %v232 = vpop.f32.mrf.mxu0
    %v233 = vadd.f32 %v146, %v232
    %v234 = vpop.f32.mrf.mxu0
    %235 = vmatprep.mubr.f32.mxu0 0.0
    %236 = vmatmul.mubr.f32.gmra.mxu0 %v156
    %v237 = vpop.f32.mrf.mxu0
    %v238 = vadd.f32 %v146, %v237
    %v239 = vpop.f32.mrf.mxu0
    %240 = vmatprep.mubr.f32.mxu0 0.0
    %241 = vmatmul.mubr.f32.gmra.mxu0 %v159
    %v242 = vpop.f32.mrf.mxu0
    %v243 = vadd.f32 %v146, %v242
    %v244 = vpop.f32.mrf.mxu0
    %245 = vdwg.mxu0
    %vm246 = vcmask 261120
    %v248 = vsel %vm246, %v131, 0
    %v251 = vsel %vm246, %v132, 0
    %v254 = vsel %vm246, %v133, 0
    %v257 = vsel %vm246, %v134, 0
    %259 = vmatprep.subr.mxu0 0.0
    %260 = vmatpush1.msra.mxu0 0.0
    %261 = vmatprep.subr.mxu0 0.0
    %262 = vmatpush1.msra.mxu0 0.0
    %263 = vmatprep.subr.mxu0 0.0
    %264 = vmatpush1.msra.mxu0 0.0
    %265 = vmatprep.subr.mxu0 0.0
    %266 = vmatpush1.msra.mxu0 0.0
    %267 = vmatprep.subr.mxu0 0.0
    %268 = vmatpush1.msra.mxu0 0.0
    %269 = vmatprep.subr.mxu0 0.0
    %270 = vmatpush1.msra.mxu0 0.0
    %271 = vmatprep.subr.mxu0 0.0
    %272 = vmatpush1.msra.mxu0 0.0
    %273 = vmatprep.subr.mxu0 0.0
    %274 = vmatpush1.msra.mxu0 0.0
    %275 = vmatprep.subr.mxu0 0.0
    %276 = vmatpush1.msra.mxu0 0.0
    %277 = vmatprep.subr.mxu0 0.0
    %278 = vmatpush1.msra.mxu0 0.0
    %279 = vmatprep.subr.mxu0 0.0
    %280 = vmatpush1.msra.mxu0 0.0
    %281 = vmatprep.subr.mxu0 0.0
    %282 = vmatpush1.msra.mxu0 0.0
    %283 = vmatprep.subr.mxu0 0.0
    %284 = vmatpush1.msra.mxu0 %v243
    %285 = vmatprep.subr.mxu0 0.0
    %286 = vmatpush1.msra.mxu0 %v238
    %287 = vmatprep.subr.mxu0 0.0
    %288 = vmatpush1.msra.mxu0 %v233
    %289 = vmatprep.subr.mxu0 0.0
    %290 = vmatpush1.msra.mxu0 %v228
    %291 = vmatprep.subr.mxu0 0.0
    %292 = vmatpush2.msra.mxu0 0.0
    %293 = vmatprep.subr.mxu0 0.0
    %294 = vmatpush2.msra.mxu0 0.0
    %295 = vmatprep.subr.mxu0 0.0
    %296 = vmatpush2.msra.mxu0 0.0
    %297 = vmatprep.subr.mxu0 0.0
    %298 = vmatpush2.msra.mxu0 0.0
    %299 = vmatprep.subr.mxu0 0.0
    %300 = vmatpush2.msra.mxu0 0.0
    %301 = vmatprep.subr.mxu0 0.0
    %302 = vmatpush2.msra.mxu0 0.0
    %303 = vmatprep.subr.mxu0 0.0
    %304 = vmatpush2.msra.mxu0 0.0
    %305 = vmatprep.subr.mxu0 0.0
    %306 = vmatpush2.msra.mxu0 0.0
    %307 = vmatprep.subr.mxu0 0.0
    %308 = vmatpush2.msra.mxu0 0.0
    %309 = vmatprep.subr.mxu0 0.0
    %310 = vmatpush2.msra.mxu0 0.0
    %311 = vmatprep.subr.mxu0 0.0
    %312 = vmatpush2.msra.mxu0 0.0
    %313 = vmatprep.subr.mxu0 0.0
    %314 = vmatpush2.msra.mxu0 0.0
    %315 = vmatprep.subr.mxu0 0.0
    %316 = vmatpush2.msra.mxu0 0.0
    %317 = vmatprep.subr.mxu0 0.0
    %318 = vmatpush2.msra.mxu0 0.0
    %319 = vmatprep.subr.mxu0 0.0
    %320 = vmatpush2.msra.mxu0 0.0
    %321 = vmatprep.subr.mxu0 0.0
    %322 = vmatpush2.msra.mxu0 0.0
    %323 = vmatprep.mubr.f32.mxu0 0.0
    %324 = vmatmul.mubr.f32.gmra.mxu0 %v248
    %v325 = vpop.f32.mrf.mxu0
    %v326 = vadd.f32 0.0, %v325
    %v327 = vpop.f32.mrf.mxu0
    %328 = vmatprep.mubr.f32.mxu0 0.0
    %329 = vmatmul.mubr.f32.gmra.mxu0 %v251
    %v330 = vpop.f32.mrf.mxu0
    %v331 = vadd.f32 0.0, %v330
    %v332 = vpop.f32.mrf.mxu0
    %333 = vmatprep.mubr.f32.mxu0 0.0
    %334 = vmatmul.mubr.f32.gmra.mxu0 %v254
    %v335 = vpop.f32.mrf.mxu0
    %v336 = vadd.f32 0.0, %v335
    %v337 = vpop.f32.mrf.mxu0
    %338 = vmatprep.mubr.f32.mxu0 0.0
    %339 = vmatmul.mubr.f32.gmra.mxu0 %v257
    %v340 = vpop.f32.mrf.mxu0
    %v341 = vadd.f32 0.0, %v340
    %v342 = vpop.f32.mrf.mxu0
    %343 = vdwg.mxu0
    %v344 = vadd.f32 %v228, %v326
    %v345 = vadd.f32 %v233, %v331
    %v346 = vadd.f32 %v238, %v336
    %v347 = vadd.f32 %v243, %v341
    %v348 = vld [vmem:[#allocation5] sm:$0xff]
    %v349 = vld [vmem:[#allocation5 + $0x8] sm:$0xff]
    %v350 = vld [vmem:[#allocation5 + $0x10] sm:$0xff]
    %v351 = vld [vmem:[#allocation5 + $0x18] sm:$0xff]
    %v352 = vld [vmem:[#allocation5 + $0x20] sm:$0xff]
    %v353 = vld [vmem:[#allocation5 + $0x28] sm:$0xff]
    %v354 = vld [vmem:[#allocation5 + $0x30] sm:$0xff]
    %v355 = vld [vmem:[#allocation5 + $0x38] sm:$0xff]
    %v356 = vld [vmem:[#allocation5 + $0x40] sm:$0xff]
    %v357 = vld [vmem:[#allocation5 + $0x48] sm:$0xff]
    %v358 = vld [vmem:[#allocation5 + $0x50] sm:$0xff]
    %v359 = vld [vmem:[#allocation5 + $0x58] sm:$0xff]
    %v360 = vld [vmem:[#allocation5 + $0x60] sm:$0xff]
    %v361 = vld [vmem:[#allocation5 + $0x68] sm:$0xff]
    %v362 = vld [vmem:[#allocation5 + $0x70] sm:$0xff]
    %v363 = vld [vmem:[#allocation5 + $0x78] sm:$0xff]
    %v364 = vld [vmem:[#allocation5 + $0x80] sm:$0xff]
    %v365 = vld [vmem:[#allocation5 + $0x88] sm:$0xff]
    %v366 = vld [vmem:[#allocation5 + $0x90] sm:$0xff]
    %v367 = vld [vmem:[#allocation5 + $0x98] sm:$0xff]
    %v368 = vld [vmem:[#allocation5 + $0xa0] sm:$0xff]
    %v369 = vld [vmem:[#allocation5 + $0xa8] sm:$0xff]
    %v370 = vld [vmem:[#allocation5 + $0xb0] sm:$0xff]
    %v371 = vld [vmem:[#allocation5 + $0xb8] sm:$0xff]
    %v372 = vld [vmem:[#allocation5 + $0xc0] sm:$0xff]
    %v373 = vld [vmem:[#allocation5 + $0xc8] sm:$0xff]
    %v374 = vld [vmem:[#allocation5 + $0xd0] sm:$0xff]
    %v375 = vld [vmem:[#allocation5 + $0xd8] sm:$0xff]
    %v376 = vld [vmem:[#allocation5 + $0xe0] sm:$0xff]
    %v377 = vld [vmem:[#allocation5 + $0xe8] sm:$0xff]
    %v378 = vld [vmem:[#allocation5 + $0xf0] sm:$0xff]
    %v379 = vld [vmem:[#allocation5 + $0xf8] sm:$0xff]
    %380 = vmatprep.subr.mxu0 %v379
    %381 = vmatpush1.msra.mxu0 %v378
    %382 = vmatprep.subr.mxu0 %v377
    %383 = vmatpush1.msra.mxu0 %v376
    %384 = vmatprep.subr.mxu0 %v375
    %385 = vmatpush1.msra.mxu0 %v374
    %386 = vmatprep.subr.mxu0 %v373
    %387 = vmatpush1.msra.mxu0 %v372
    %388 = vmatprep.subr.mxu0 %v371
    %389 = vmatpush1.msra.mxu0 %v370
    %390 = vmatprep.subr.mxu0 %v369
    %391 = vmatpush1.msra.mxu0 %v368
    %392 = vmatprep.subr.mxu0 %v367
    %393 = vmatpush1.msra.mxu0 %v366
    %394 = vmatprep.subr.mxu0 %v365
    %395 = vmatpush1.msra.mxu0 %v364
    %396 = vmatprep.subr.mxu0 %v363
    %397 = vmatpush1.msra.mxu0 %v362
    %398 = vmatprep.subr.mxu0 %v361
    %399 = vmatpush1.msra.mxu0 %v360
    %400 = vmatprep.subr.mxu0 %v359
    %401 = vmatpush1.msra.mxu0 %v358
    %402 = vmatprep.subr.mxu0 %v357
    %403 = vmatpush1.msra.mxu0 %v356
    %404 = vmatprep.subr.mxu0 %v355
    %405 = vmatpush1.msra.mxu0 %v354
    %406 = vmatprep.subr.mxu0 %v353
    %407 = vmatpush1.msra.mxu0 %v352
    %408 = vmatprep.subr.mxu0 %v351
    %409 = vmatpush1.msra.mxu0 %v350
    %410 = vmatprep.subr.mxu0 %v349
    %411 = vmatpush1.msra.mxu0 %v348
    %412 = vmatprep.subr.mxu0 0.0
    %413 = vmatpush2.msra.mxu0 0.0
    %414 = vmatprep.subr.mxu0 0.0
    %415 = vmatpush2.msra.mxu0 0.0
    %416 = vmatprep.subr.mxu0 0.0
    %417 = vmatpush2.msra.mxu0 0.0
    %418 = vmatprep.subr.mxu0 0.0
    %419 = vmatpush2.msra.mxu0 0.0
    %420 = vmatprep.subr.mxu0 0.0
    %421 = vmatpush2.msra.mxu0 0.0
    %422 = vmatprep.subr.mxu0 0.0
    %423 = vmatpush2.msra.mxu0 0.0
    %424 = vmatprep.subr.mxu0 0.0
    %425 = vmatpush2.msra.mxu0 0.0
    %426 = vmatprep.subr.mxu0 0.0
    %427 = vmatpush2.msra.mxu0 0.0
    %428 = vmatprep.subr.mxu0 0.0
    %429 = vmatpush2.msra.mxu0 0.0
    %430 = vmatprep.subr.mxu0 0.0
    %431 = vmatpush2.msra.mxu0 0.0
    %432 = vmatprep.subr.mxu0 0.0
    %433 = vmatpush2.msra.mxu0 0.0
    %434 = vmatprep.subr.mxu0 0.0
    %435 = vmatpush2.msra.mxu0 0.0
    %436 = vmatprep.subr.mxu0 0.0
    %437 = vmatpush2.msra.mxu0 0.0
    %438 = vmatprep.subr.mxu0 0.0
    %439 = vmatpush2.msra.mxu0 0.0
    %440 = vmatprep.subr.mxu0 0.0
    %441 = vmatpush2.msra.mxu0 0.0
    %442 = vmatprep.subr.mxu0 0.0
    %443 = vmatpush2.msra.mxu0 0.0
    %444 = vmatprep.mubr.f32.mxu0 0.0
    %445 = vmatmul.mubr.f32.gmra.mxu0 %v344
    %v446 = vpop.f32.mrf.mxu0
    %v447 = vadd.f32 0.0, %v446
    %v448 = vpop.f32.mrf.mxu0
    %v449 = vadd.f32 0.0, %v448
    %450 = vmatprep.mubr.f32.mxu0 0.0
    %451 = vmatmul.mubr.f32.gmra.mxu0 %v345
    %v452 = vpop.f32.mrf.mxu0
    %v453 = vadd.f32 0.0, %v452
    %v454 = vpop.f32.mrf.mxu0
    %v455 = vadd.f32 0.0, %v454
    %456 = vmatprep.mubr.f32.mxu0 0.0
    %457 = vmatmul.mubr.f32.gmra.mxu0 %v346
    %v458 = vpop.f32.mrf.mxu0
    %v459 = vadd.f32 0.0, %v458
    %v460 = vpop.f32.mrf.mxu0
    %v461 = vadd.f32 0.0, %v460
    %462 = vmatprep.mubr.f32.mxu0 0.0
    %463 = vmatmul.mubr.f32.gmra.mxu0 %v347
    %v464 = vpop.f32.mrf.mxu0
    %v465 = vadd.f32 0.0, %v464
    %v466 = vpop.f32.mrf.mxu0
    %v467 = vadd.f32 0.0, %v466
    %468 = vdwg.mxu0
    %v469 = vld [vmem:[%s5] sm:$0x3]
    %v470 = vld [vmem:[#allocation7] sm:$0x3]
    %v471 = vadd.f32 %v447, %v453
    %v472 = vadd.f32 %v471, %v459
    %v473 = vadd.f32 %v472, %v465
    %v474 = vrot.slane %v473, 4
    %v475 = vadd.f32 %v473, %v474
    %v476 = vrot.slane %v475, 2
    %v477 = vadd.f32 %v475, %v476
    %v478 = vrot.slane %v477, 1
    %v479 = vadd.f32 %v477, %v478
    %v480 = vadd.f32 %v449, %v455
    %v481 = vadd.f32 %v480, %v461
    %v482 = vadd.f32 %v481, %v467
    %v483 = vrot.slane %v482, 4
    %v484 = vadd.f32 %v482, %v483
    %v485 = vrot.slane %v484, 2
    %v486 = vadd.f32 %v484, %v485
    %v487 = vrot.slane %v486, 1
    %v488 = vadd.f32 %v486, %v487
    %v489 = vmul.f32 %v479, 0.03125
    %v490 = vmul.f32 %v488, 0.03125
    %v491 = vmul.f32 %v447, %v447
    %v492 = vmul.f32 %v449, %v449
    %v493 = vmul.f32 %v453, %v453
    %v494 = vmul.f32 %v455, %v455
    %v495 = vmul.f32 %v459, %v459
    %v496 = vmul.f32 %v461, %v461
    %v497 = vmul.f32 %v465, %v465
    %v498 = vmul.f32 %v467, %v467
    %v499 = vadd.f32 %v491, %v493
    %v500 = vadd.f32 %v499, %v495
    %v501 = vadd.f32 %v500, %v497
    %v502 = vrot.slane %v501, 4
    %v503 = vadd.f32 %v501, %v502
    %v504 = vrot.slane %v503, 2
    %v505 = vadd.f32 %v503, %v504
    %v506 = vrot.slane %v505, 1
    %v507 = vadd.f32 %v505, %v506
    %v508 = vadd.f32 %v492, %v494
    %v509 = vadd.f32 %v508, %v496
    %v510 = vadd.f32 %v509, %v498
    %v511 = vrot.slane %v510, 4
    %v512 = vadd.f32 %v510, %v511
    %v513 = vrot.slane %v512, 2
    %v514 = vadd.f32 %v512, %v513
    %v515 = vrot.slane %v514, 1
    %v516 = vadd.f32 %v514, %v515
    %v517 = vmul.f32 %v507, 0.03125
    %v518 = vmul.f32 %v516, 0.03125
    %v519 = vmul.f32 %v489, %v489
    %v520 = vmul.f32 %v490, %v490
    %v521 = vsub.f32 %v517, %v519
    %v522 = vsub.f32 %v518, %v520
    %v523 = vmax.f32 %v521, 0.0
    %v524 = vmax.f32 %v522, 0.0
    %v525 = vadd.f32 %v523, 1e-05
    %v526 = vadd.f32 %v524, 1e-05
    %v527 = vrsqrt.pop %v525
    %v528 = vrsqrt.pop %v526
    %v531 = vcombine.low %v527, %v528
    %v533 = vunpack.c.l.s4 1966171168
    %v534 = vunpack.c.0.s8 %v533
    %v535 = vlaneseq
    %v536 = vshrl.u32 %v535, 7
    %v537 = vsub.s32 %v534, %v536
    %v538 = vrot.slane %v531, %v537
    %v540 = vunpack.c.l.s4 1966171168
    %v541 = vunpack.c.0.s8 %v540
    %v542 = vlaneseq
    %v543 = vshrl.u32 %v542, 7
    %v544 = vsub.s32 %v541, %v543
    %v545 = vrot.slane %v538, %v544
    %v547 = vmul.f32 %v469, %v545
    %v549 = vlaneseq
    %v550 = vshrl.u32 %v549, 7
    %v551 = vsub.s32 0, %v550
    %v552 = vrot.slane %v547, %v551
    %v553 = vlaneseq
    %v554 = vshrl.u32 %v553, 7
    %v555 = vsub.s32 1, %v554
    %v556 = vrot.slane %v547, %v555
    %v559 = vmul.f32 %v489, %v552
    %v560 = vmul.f32 %v490, %v556
    %v563 = vcombine.low %v559, %v560
    %v565 = vunpack.c.l.s4 1966171168
    %v566 = vunpack.c.0.s8 %v565
    %v567 = vlaneseq
    %v568 = vshrl.u32 %v567, 7
    %v569 = vsub.s32 %v566, %v568
    %v570 = vrot.slane %v563, %v569
    %v572 = vunpack.c.l.s4 1966171168
    %v573 = vunpack.c.0.s8 %v572
    %v574 = vlaneseq
    %v575 = vshrl.u32 %v574, 7
    %v576 = vsub.s32 %v573, %v575
    %v577 = vrot.slane %v570, %v576
    %v579 = vsub.f32 %v470, %v577
    %v580 = vmul.f32 %v447, %v552
    %v581 = vmul.f32 %v449, %v556
    %v582 = vmul.f32 %v453, %v552
    %v583 = vmul.f32 %v455, %v556
    %v584 = vmul.f32 %v459, %v552
    %v585 = vmul.f32 %v461, %v556
    %v586 = vmul.f32 %v465, %v552
    %v587 = vmul.f32 %v467, %v556
    %v589 = vlaneseq
    %v590 = vshrl.u32 %v589, 7
    %v591 = vsub.s32 0, %v590
    %v592 = vrot.slane %v579, %v591
    %v593 = vlaneseq
    %v594 = vshrl.u32 %v593, 7
    %v595 = vsub.s32 1, %v594
    %v596 = vrot.slane %v579, %v595
    %v599 = vadd.f32 %v580, %v592
    %v600 = vadd.f32 %v581, %v596
    %v601 = vadd.f32 %v582, %v592
    %v602 = vadd.f32 %v583, %v596
    %v603 = vadd.f32 %v584, %v592
    %v604 = vadd.f32 %v585, %v596
    %v605 = vadd.f32 %v586, %v592
    %v606 = vadd.f32 %v587, %v596
    %v607 = vmax.f32 %v599, 0.0
    %v608 = vmax.f32 %v600, 0.0
    %v609 = vmax.f32 %v601, 0.0
    %v610 = vmax.f32 %v602, 0.0
    %v611 = vmax.f32 %v603, 0.0
    %v612 = vmax.f32 %v604, 0.0
    %v613 = vmax.f32 %v605, 0.0
    %v614 = vmax.f32 %v606, 0.0
    %v615 = vld [vmem:[#allocation8] sm:$0xff]
    %v616 = vld [vmem:[#allocation8 + $0x8] sm:$0xff]
    %v617 = vld [vmem:[#allocation8 + $0x10] sm:$0xff]
    %v618 = vld [vmem:[#allocation8 + $0x18] sm:$0xff]
    %v619 = vld [vmem:[#allocation8 + $0x20] sm:$0xff]
    %v620 = vld [vmem:[#allocation8 + $0x28] sm:$0xff]
    %v621 = vld [vmem:[#allocation8 + $0x30] sm:$0xff]
    %v622 = vld [vmem:[#allocation8 + $0x38] sm:$0xff]
    %v623 = vld [vmem:[#allocation8 + $0x40] sm:$0xff]
    %v624 = vld [vmem:[#allocation8 + $0x48] sm:$0xff]
    %v625 = vld [vmem:[#allocation8 + $0x50] sm:$0xff]
    %v626 = vld [vmem:[#allocation8 + $0x58] sm:$0xff]
    %v627 = vld [vmem:[#allocation8 + $0x60] sm:$0xff]
    %v628 = vld [vmem:[#allocation8 + $0x68] sm:$0xff]
    %v629 = vld [vmem:[#allocation8 + $0x70] sm:$0xff]
    %v630 = vld [vmem:[#allocation8 + $0x78] sm:$0xff]
    %v631 = vld [vmem:[#allocation8 + $0x80] sm:$0xff]
    %v632 = vld [vmem:[#allocation8 + $0x88] sm:$0xff]
    %v633 = vld [vmem:[#allocation8 + $0x90] sm:$0xff]
    %v634 = vld [vmem:[#allocation8 + $0x98] sm:$0xff]
    %v635 = vld [vmem:[#allocation8 + $0xa0] sm:$0xff]
    %v636 = vld [vmem:[#allocation8 + $0xa8] sm:$0xff]
    %v637 = vld [vmem:[#allocation8 + $0xb0] sm:$0xff]
    %v638 = vld [vmem:[#allocation8 + $0xb8] sm:$0xff]
    %v639 = vld [vmem:[#allocation8 + $0xc0] sm:$0xff]
    %v640 = vld [vmem:[#allocation8 + $0xc8] sm:$0xff]
    %v641 = vld [vmem:[#allocation8 + $0xd0] sm:$0xff]
    %v642 = vld [vmem:[#allocation8 + $0xd8] sm:$0xff]
    %v643 = vld [vmem:[#allocation8 + $0xe0] sm:$0xff]
    %v644 = vld [vmem:[#allocation8 + $0xe8] sm:$0xff]
    %v645 = vld [vmem:[#allocation8 + $0xf0] sm:$0xff]
    %v646 = vld [vmem:[#allocation8 + $0xf8] sm:$0xff]
    %647 = vmatprep.subr.mxu0 0.0
    %648 = vmatpush1.msra.mxu0 %v630
    %649 = vmatprep.subr.mxu0 0.0
    %650 = vmatpush1.msra.mxu0 %v629
    %651 = vmatprep.subr.mxu0 0.0
    %652 = vmatpush1.msra.mxu0 %v628
    %653 = vmatprep.subr.mxu0 0.0
    %654 = vmatpush1.msra.mxu0 %v627
    %655 = vmatprep.subr.mxu0 0.0
    %656 = vmatpush1.msra.mxu0 %v626
    %657 = vmatprep.subr.mxu0 0.0
    %658 = vmatpush1.msra.mxu0 %v625
    %659 = vmatprep.subr.mxu0 0.0
    %660 = vmatpush1.msra.mxu0 %v624
    %661 = vmatprep.subr.mxu0 0.0
    %662 = vmatpush1.msra.mxu0 %v623
    %663 = vmatprep.subr.mxu0 0.0
    %664 = vmatpush1.msra.mxu0 %v622
    %665 = vmatprep.subr.mxu0 0.0
    %666 = vmatpush1.msra.mxu0 %v621
    %667 = vmatprep.subr.mxu0 0.0
    %668 = vmatpush1.msra.mxu0 %v620
    %669 = vmatprep.subr.mxu0 0.0
    %670 = vmatpush1.msra.mxu0 %v619
    %671 = vmatprep.subr.mxu0 0.0
    %672 = vmatpush1.msra.mxu0 %v618
    %673 = vmatprep.subr.mxu0 0.0
    %674 = vmatpush1.msra.mxu0 %v617
    %675 = vmatprep.subr.mxu0 0.0
    %676 = vmatpush1.msra.mxu0 %v616
    %677 = vmatprep.subr.mxu0 0.0
    %678 = vmatpush1.msra.mxu0 %v615
    %679 = vmatprep.subr.mxu0 0.0
    %680 = vmatpush2.msra.mxu0 %v646
    %681 = vmatprep.subr.mxu0 0.0
    %682 = vmatpush2.msra.mxu0 %v645
    %683 = vmatprep.subr.mxu0 0.0
    %684 = vmatpush2.msra.mxu0 %v644
    %685 = vmatprep.subr.mxu0 0.0
    %686 = vmatpush2.msra.mxu0 %v643
    %687 = vmatprep.subr.mxu0 0.0
    %688 = vmatpush2.msra.mxu0 %v642
    %689 = vmatprep.subr.mxu0 0.0
    %690 = vmatpush2.msra.mxu0 %v641
    %691 = vmatprep.subr.mxu0 0.0
    %692 = vmatpush2.msra.mxu0 %v640
    %693 = vmatprep.subr.mxu0 0.0
    %694 = vmatpush2.msra.mxu0 %v639
    %695 = vmatprep.subr.mxu0 0.0
    %696 = vmatpush2.msra.mxu0 %v638
    %697 = vmatprep.subr.mxu0 0.0
    %698 = vmatpush2.msra.mxu0 %v637
    %699 = vmatprep.subr.mxu0 0.0
    %700 = vmatpush2.msra.mxu0 %v636
    %701 = vmatprep.subr.mxu0 0.0
    %702 = vmatpush2.msra.mxu0 %v635
    %703 = vmatprep.subr.mxu0 0.0
    %704 = vmatpush2.msra.mxu0 %v634
    %705 = vmatprep.subr.mxu0 0.0
    %706 = vmatpush2.msra.mxu0 %v633
    %707 = vmatprep.subr.mxu0 0.0
    %708 = vmatpush2.msra.mxu0 %v632
    %709 = vmatprep.subr.mxu0 0.0
    %710 = vmatpush2.msra.mxu0 %v631
    %711 = vmatprep.mubr.f32.mxu0 %v608
    %712 = vmatmul.mubr.f32.gmra.mxu0 %v607
    %v713 = vpop.f32.mrf.mxu0
    %v714 = vadd.f32 0.0, %v713
    %v715 = vpop.f32.mrf.mxu0
    %716 = vmatprep.mubr.f32.mxu0 %v610
    %717 = vmatmul.mubr.f32.gmra.mxu0 %v609
    %v718 = vpop.f32.mrf.mxu0
    %v719 = vadd.f32 0.0, %v718
    %v720 = vpop.f32.mrf.mxu0
    %721 = vmatprep.mubr.f32.mxu0 %v612
    %722 = vmatmul.mubr.f32.gmra.mxu0 %v611
    %v723 = vpop.f32.mrf.mxu0
    %v724 = vadd.f32 0.0, %v723
    %v725 = vpop.f32.mrf.mxu0
    %726 = vmatprep.mubr.f32.mxu0 %v614
    %727 = vmatmul.mubr.f32.gmra.mxu0 %v613
    %v728 = vpop.f32.mrf.mxu0
    %v729 = vadd.f32 0.0, %v728
    %v730 = vpop.f32.mrf.mxu0
    %731 = vdwg.mxu0
    %v732 = vld [vmem:[%s8] sm:$0x1]
    %v733 = vld [vmem:[%s9] sm:$0x1]
    %v734 = vadd.f32 %v714, %v719
    %v735 = vadd.f32 %v734, %v724
    %v736 = vadd.f32 %v735, %v729
    %v737 = vrot.slane %v736, 4
    %v738 = vadd.f32 %v736, %v737
    %v739 = vrot.slane %v738, 2
    %v740 = vadd.f32 %v738, %v739
    %v741 = vrot.slane %v740, 1
    %v742 = vadd.f32 %v740, %v741
    %v743 = vmul.f32 %v742, 0.03125
    %v744 = vmul.f32 %v714, %v714
    %v745 = vmul.f32 %v719, %v719
    %v746 = vmul.f32 %v724, %v724
    %v747 = vmul.f32 %v729, %v729
    %v748 = vadd.f32 %v744, %v745
    %v749 = vadd.f32 %v748, %v746
    %v750 = vadd.f32 %v749, %v747
    %v751 = vrot.slane %v750, 4
    %v752 = vadd.f32 %v750, %v751
    %v753 = vrot.slane %v752, 2
    %v754 = vadd.f32 %v752, %v753
    %v755 = vrot.slane %v754, 1
    %v756 = vadd.f32 %v754, %v755
    %v757 = vmul.f32 %v756, 0.03125
    %v758 = vmul.f32 %v743, %v743
    %v759 = vsub.f32 %v757, %v758
    %v760 = vmax.f32 %v759, 0.0
    %v761 = vadd.f32 %v760, 1e-05
    %v762 = vrsqrt.pop %v761
    %v763 = vmul.f32 %v732, %v762
    %v764 = vmul.f32 %v743, %v763
    %v765 = vsub.f32 %v733, %v764
    %v767 = vlaneseq
    %v768 = vshrl.u32 %v767, 7
    %v769 = vsub.s32 0, %v768
    %v770 = vrot.slane %v763, %v769
    %v772 = vmul.f32 %v714, %v770
    %v773 = vmul.f32 %v719, %v770
    %v774 = vmul.f32 %v724, %v770
    %v775 = vmul.f32 %v729, %v770
    %v777 = vlaneseq
    %v778 = vshrl.u32 %v777, 7
    %v779 = vsub.s32 0, %v778
    %v780 = vrot.slane %v765, %v779
    %v782 = vadd.f32 %v772, %v780
    %v783 = vadd.f32 %v773, %v780
    %v784 = vadd.f32 %v774, %v780
    %v785 = vadd.f32 %v775, %v780
    %v786 = vmax.f32 %v782, 0.0
    %v787 = vmax.f32 %v783, 0.0
    %v788 = vmax.f32 %v784, 0.0
    %v789 = vmax.f32 %v785, 0.0
    %790 = vmatprep.subr.mxu0 0.0
    %791 = vmatpush1.msra.mxu0 0.0
    %792 = vmatprep.subr.mxu0 0.0
    %793 = vmatpush1.msra.mxu0 0.0
    %794 = vmatprep.subr.mxu0 0.0
    %795 = vmatpush1.msra.mxu0 0.0
    %796 = vmatprep.subr.mxu0 0.0
    %797 = vmatpush1.msra.mxu0 0.0
    %798 = vmatprep.subr.mxu0 0.0
    %799 = vmatpush1.msra.mxu0 0.0
    %800 = vmatprep.subr.mxu0 0.0
    %801 = vmatpush1.msra.mxu0 0.0
    %802 = vmatprep.subr.mxu0 0.0
    %803 = vmatpush1.msra.mxu0 0.0
    %804 = vmatprep.subr.mxu0 0.0
    %805 = vmatpush1.msra.mxu0 0.0
    %806 = vmatprep.subr.mxu0 0.0
    %807 = vmatpush1.msra.mxu0 0.0
    %808 = vmatprep.subr.mxu0 0.0
    %809 = vmatpush1.msra.mxu0 0.0
    %810 = vmatprep.subr.mxu0 0.0
    %811 = vmatpush1.msra.mxu0 0.0
    %812 = vmatprep.subr.mxu0 0.0
    %813 = vmatpush1.msra.mxu0 0.0
    %814 = vmatprep.subr.mxu0 0.0
    %815 = vmatpush1.msra.mxu0 %v789
    %816 = vmatprep.subr.mxu0 0.0
    %817 = vmatpush1.msra.mxu0 %v788
    %818 = vmatprep.subr.mxu0 0.0
    %819 = vmatpush1.msra.mxu0 %v787
    %820 = vmatprep.subr.mxu0 0.0
    %821 = vmatpush1.msra.mxu0 %v786
    %822 = vmatprep.subr.mxu0 0.0
    %823 = vmatpush2.msra.mxu0 0.0
    %824 = vmatprep.subr.mxu0 0.0
    %825 = vmatpush2.msra.mxu0 0.0
    %826 = vmatprep.subr.mxu0 0.0
    %827 = vmatpush2.msra.mxu0 0.0
    %828 = vmatprep.subr.mxu0 0.0
    %829 = vmatpush2.msra.mxu0 0.0
    %830 = vmatprep.subr.mxu0 0.0
    %831 = vmatpush2.msra.mxu0 0.0
    %832 = vmatprep.subr.mxu0 0.0
    %833 = vmatpush2.msra.mxu0 0.0
    %834 = vmatprep.subr.mxu0 0.0
    %835 = vmatpush2.msra.mxu0 0.0
    %836 = vmatprep.subr.mxu0 0.0
    %837 = vmatpush2.msra.mxu0 0.0
    %838 = vmatprep.subr.mxu0 0.0
    %839 = vmatpush2.msra.mxu0 0.0
    %840 = vmatprep.subr.mxu0 0.0
    %841 = vmatpush2.msra.mxu0 0.0
    %842 = vmatprep.subr.mxu0 0.0
    %843 = vmatpush2.msra.mxu0 0.0
    %844 = vmatprep.subr.mxu0 0.0
    %845 = vmatpush2.msra.mxu0 0.0
    %846 = vmatprep.subr.mxu0 0.0
    %847 = vmatpush2.msra.mxu0 0.0
    %848 = vmatprep.subr.mxu0 0.0
    %849 = vmatpush2.msra.mxu0 0.0
    %850 = vmatprep.subr.mxu0 0.0
    %851 = vmatpush2.msra.mxu0 0.0
    %852 = vmatprep.subr.mxu0 0.0
    %853 = vmatpush2.msra.mxu0 0.0
    %854 = vmatprep.mubr.f32.mxu0 0.0
    %855 = vmatmul.mubr.f32.gmra.mxu0 %v248
    %v856 = vpop.f32.mrf.mxu0
    %v857 = vadd.f32 0.0, %v856
    %v858 = vpop.f32.mrf.mxu0
    %859 = vmatprep.mubr.f32.mxu0 0.0
    %860 = vmatmul.mubr.f32.gmra.mxu0 %v251
    %v861 = vpop.f32.mrf.mxu0
    %v862 = vadd.f32 0.0, %v861
    %v863 = vpop.f32.mrf.mxu0
    %864 = vmatprep.mubr.f32.mxu0 0.0
    %865 = vmatmul.mubr.f32.gmra.mxu0 %v254
    %v866 = vpop.f32.mrf.mxu0
    %v867 = vadd.f32 0.0, %v866
    %v868 = vpop.f32.mrf.mxu0
    %869 = vmatprep.mubr.f32.mxu0 0.0
    %870 = vmatmul.mubr.f32.gmra.mxu0 %v257
    %v871 = vpop.f32.mrf.mxu0
    %v872 = vadd.f32 0.0, %v871
    %v873 = vpop.f32.mrf.mxu0
    %874 = vdwg.mxu0
    %v875 = vadd.f32 %v786, %v857
    %v876 = vadd.f32 %v787, %v862
    %v877 = vadd.f32 %v788, %v867
    %v878 = vadd.f32 %v789, %v872
    %s879 = scalar_lea.vmem [#allocation5], 256
    %v880 = vld [vmem:[%s879] sm:$0xff]
    %v881 = vld [vmem:[%s879 + $0x8] sm:$0xff]
    %v882 = vld [vmem:[%s879 + $0x10] sm:$0xff]
    %v883 = vld [vmem:[%s879 + $0x18] sm:$0xff]
    %v884 = vld [vmem:[%s879 + $0x20] sm:$0xff]
    %v885 = vld [vmem:[%s879 + $0x28] sm:$0xff]
    %v886 = vld [vmem:[%s879 + $0x30] sm:$0xff]
    %v887 = vld [vmem:[%s879 + $0x38] sm:$0xff]
    %v888 = vld [vmem:[%s879 + $0x40] sm:$0xff]
    %v889 = vld [vmem:[%s879 + $0x48] sm:$0xff]
    %v890 = vld [vmem:[%s879 + $0x50] sm:$0xff]
    %v891 = vld [vmem:[%s879 + $0x58] sm:$0xff]
    %v892 = vld [vmem:[%s879 + $0x60] sm:$0xff]
    %v893 = vld [vmem:[%s879 + $0x68] sm:$0xff]
    %v894 = vld [vmem:[%s879 + $0x70] sm:$0xff]
    %v895 = vld [vmem:[%s879 + $0x78] sm:$0xff]
    %v896 = vld [vmem:[%s879 + $0x80] sm:$0xff]
    %v897 = vld [vmem:[%s879 + $0x88] sm:$0xff]
    %v898 = vld [vmem:[%s879 + $0x90] sm:$0xff]
    %v899 = vld [vmem:[%s879 + $0x98] sm:$0xff]
    %v900 = vld [vmem:[%s879 + $0xa0] sm:$0xff]
    %v901 = vld [vmem:[%s879 + $0xa8] sm:$0xff]
    %v902 = vld [vmem:[%s879 + $0xb0] sm:$0xff]
    %v903 = vld [vmem:[%s879 + $0xb8] sm:$0xff]
    %v904 = vld [vmem:[%s879 + $0xc0] sm:$0xff]
    %v905 = vld [vmem:[%s879 + $0xc8] sm:$0xff]
    %v906 = vld [vmem:[%s879 + $0xd0] sm:$0xff]
    %v907 = vld [vmem:[%s879 + $0xd8] sm:$0xff]
    %v908 = vld [vmem:[%s879 + $0xe0] sm:$0xff]
    %v909 = vld [vmem:[%s879 + $0xe8] sm:$0xff]
    %v910 = vld [vmem:[%s879 + $0xf0] sm:$0xff]
    %v911 = vld [vmem:[%s879 + $0xf8] sm:$0xff]
    %912 = vmatprep.subr.mxu0 %v911
    %913 = vmatpush1.msra.mxu0 %v910
    %914 = vmatprep.subr.mxu0 %v909
    %915 = vmatpush1.msra.mxu0 %v908
    %916 = vmatprep.subr.mxu0 %v907
    %917 = vmatpush1.msra.mxu0 %v906
    %918 = vmatprep.subr.mxu0 %v905
    %919 = vmatpush1.msra.mxu0 %v904
    %920 = vmatprep.subr.mxu0 %v903
    %921 = vmatpush1.msra.mxu0 %v902
    %922 = vmatprep.subr.mxu0 %v901
    %923 = vmatpush1.msra.mxu0 %v900
    %924 = vmatprep.subr.mxu0 %v899
    %925 = vmatpush1.msra.mxu0 %v898
    %926 = vmatprep.subr.mxu0 %v897
    %927 = vmatpush1.msra.mxu0 %v896
    %928 = vmatprep.subr.mxu0 %v895
    %929 = vmatpush1.msra.mxu0 %v894
    %930 = vmatprep.subr.mxu0 %v893
    %931 = vmatpush1.msra.mxu0 %v892
    %932 = vmatprep.subr.mxu0 %v891
    %933 = vmatpush1.msra.mxu0 %v890
    %934 = vmatprep.subr.mxu0 %v889
    %935 = vmatpush1.msra.mxu0 %v888
    %936 = vmatprep.subr.mxu0 %v887
    %937 = vmatpush1.msra.mxu0 %v886
    %938 = vmatprep.subr.mxu0 %v885
    %939 = vmatpush1.msra.mxu0 %v884
    %940 = vmatprep.subr.mxu0 %v883
    %941 = vmatpush1.msra.mxu0 %v882
    %942 = vmatprep.subr.mxu0 %v881
    %943 = vmatpush1.msra.mxu0 %v880
    %944 = vmatprep.subr.mxu0 0.0
    %945 = vmatpush2.msra.mxu0 0.0
    %946 = vmatprep.subr.mxu0 0.0
    %947 = vmatpush2.msra.mxu0 0.0
    %948 = vmatprep.subr.mxu0 0.0
    %949 = vmatpush2.msra.mxu0 0.0
    %950 = vmatprep.subr.mxu0 0.0
    %951 = vmatpush2.msra.mxu0 0.0
    %952 = vmatprep.subr.mxu0 0.0
    %953 = vmatpush2.msra.mxu0 0.0
    %954 = vmatprep.subr.mxu0 0.0
    %955 = vmatpush2.msra.mxu0 0.0
    %956 = vmatprep.subr.mxu0 0.0
    %957 = vmatpush2.msra.mxu0 0.0
    %958 = vmatprep.subr.mxu0 0.0
    %959 = vmatpush2.msra.mxu0 0.0
    %960 = vmatprep.subr.mxu0 0.0
    %961 = vmatpush2.msra.mxu0 0.0
    %962 = vmatprep.subr.mxu0 0.0
    %963 = vmatpush2.msra.mxu0 0.0
    %964 = vmatprep.subr.mxu0 0.0
    %965 = vmatpush2.msra.mxu0 0.0
    %966 = vmatprep.subr.mxu0 0.0
    %967 = vmatpush2.msra.mxu0 0.0
    %968 = vmatprep.subr.mxu0 0.0
    %969 = vmatpush2.msra.mxu0 0.0
    %970 = vmatprep.subr.mxu0 0.0
    %971 = vmatpush2.msra.mxu0 0.0
    %972 = vmatprep.subr.mxu0 0.0
    %973 = vmatpush2.msra.mxu0 0.0
    %974 = vmatprep.subr.mxu0 0.0
    %975 = vmatpush2.msra.mxu0 0.0
    %976 = vmatprep.mubr.f32.mxu0 0.0
    %977 = vmatmul.mubr.f32.gmra.mxu0 %v875
    %v978 = vpop.f32.mrf.mxu0
    %v979 = vadd.f32 0.0, %v978
    %v980 = vpop.f32.mrf.mxu0
    %v981 = vadd.f32 0.0, %v980
    %982 = vmatprep.mubr.f32.mxu0 0.0
    %983 = vmatmul.mubr.f32.gmra.mxu0 %v876
    %v984 = vpop.f32.mrf.mxu0
    %v985 = vadd.f32 0.0, %v984
    %v986 = vpop.f32.mrf.mxu0
    %v987 = vadd.f32 0.0, %v986
    %988 = vmatprep.mubr.f32.mxu0 0.0
    %989 = vmatmul.mubr.f32.gmra.mxu0 %v877
    %v990 = vpop.f32.mrf.mxu0
    %v991 = vadd.f32 0.0, %v990
    %v992 = vpop.f32.mrf.mxu0
    %v993 = vadd.f32 0.0, %v992
    %994 = vmatprep.mubr.f32.mxu0 0.0
    %995 = vmatmul.mubr.f32.gmra.mxu0 %v878
    %v996 = vpop.f32.mrf.mxu0
    %v997 = vadd.f32 0.0, %v996
    %v998 = vpop.f32.mrf.mxu0
    %v999 = vadd.f32 0.0, %v998
    %1000 = vdwg.mxu0
    %s1001 = scalar_lea.vmem %s5, 2
    %v1002 = vld [vmem:[%s1001] sm:$0x3]
    %s1003 = scalar_lea.vmem [#allocation7], 2
    %v1004 = vld [vmem:[%s1003] sm:$0x3]
    %v1005 = vadd.f32 %v979, %v985
    %v1006 = vadd.f32 %v1005, %v991
    %v1007 = vadd.f32 %v1006, %v997
    %v1008 = vrot.slane %v1007, 4
    %v1009 = vadd.f32 %v1007, %v1008
    %v1010 = vrot.slane %v1009, 2
    %v1011 = vadd.f32 %v1009, %v1010
    %v1012 = vrot.slane %v1011, 1
    %v1013 = vadd.f32 %v1011, %v1012
    %v1014 = vadd.f32 %v981, %v987
    %v1015 = vadd.f32 %v1014, %v993
    %v1016 = vadd.f32 %v1015, %v999
    %v1017 = vrot.slane %v1016, 4
    %v1018 = vadd.f32 %v1016, %v1017
    %v1019 = vrot.slane %v1018, 2
    %v1020 = vadd.f32 %v1018, %v1019
    %v1021 = vrot.slane %v1020, 1
    %v1022 = vadd.f32 %v1020, %v1021
    %v1023 = vmul.f32 %v1013, 0.03125
    %v1024 = vmul.f32 %v1022, 0.03125
    %v1025 = vmul.f32 %v979, %v979
    %v1026 = vmul.f32 %v981, %v981
    %v1027 = vmul.f32 %v985, %v985
    %v1028 = vmul.f32 %v987, %v987
    %v1029 = vmul.f32 %v991, %v991
    %v1030 = vmul.f32 %v993, %v993
    %v1031 = vmul.f32 %v997, %v997
    %v1032 = vmul.f32 %v999, %v999
    %v1033 = vadd.f32 %v1025, %v1027
    %v1034 = vadd.f32 %v1033, %v1029
    %v1035 = vadd.f32 %v1034, %v1031
    %v1036 = vrot.slane %v1035, 4
    %v1037 = vadd.f32 %v1035, %v1036
    %v1038 = vrot.slane %v1037, 2
    %v1039 = vadd.f32 %v1037, %v1038
    %v1040 = vrot.slane %v1039, 1
    %v1041 = vadd.f32 %v1039, %v1040
    %v1042 = vadd.f32 %v1026, %v1028
    %v1043 = vadd.f32 %v1042, %v1030
    %v1044 = vadd.f32 %v1043, %v1032
    %v1045 = vrot.slane %v1044, 4
    %v1046 = vadd.f32 %v1044, %v1045
    %v1047 = vrot.slane %v1046, 2
    %v1048 = vadd.f32 %v1046, %v1047
    %v1049 = vrot.slane %v1048, 1
    %v1050 = vadd.f32 %v1048, %v1049
    %v1051 = vmul.f32 %v1041, 0.03125
    %v1052 = vmul.f32 %v1050, 0.03125
    %v1053 = vmul.f32 %v1023, %v1023
    %v1054 = vmul.f32 %v1024, %v1024
    %v1055 = vsub.f32 %v1051, %v1053
    %v1056 = vsub.f32 %v1052, %v1054
    %v1057 = vmax.f32 %v1055, 0.0
    %v1058 = vmax.f32 %v1056, 0.0
    %v1059 = vadd.f32 %v1057, 1e-05
    %v1060 = vadd.f32 %v1058, 1e-05
    %v1061 = vrsqrt.pop %v1059
    %v1062 = vrsqrt.pop %v1060
    %v1065 = vcombine.low %v1061, %v1062
    %v1067 = vunpack.c.l.s4 1966171168
    %v1068 = vunpack.c.0.s8 %v1067
    %v1069 = vlaneseq
    %v1070 = vshrl.u32 %v1069, 7
    %v1071 = vsub.s32 %v1068, %v1070
    %v1072 = vrot.slane %v1065, %v1071
    %v1074 = vunpack.c.l.s4 1966171168
    %v1075 = vunpack.c.0.s8 %v1074
    %v1076 = vlaneseq
    %v1077 = vshrl.u32 %v1076, 7
    %v1078 = vsub.s32 %v1075, %v1077
    %v1079 = vrot.slane %v1072, %v1078
    %v1081 = vmul.f32 %v1002, %v1079
    %v1083 = vlaneseq
    %v1084 = vshrl.u32 %v1083, 7
    %v1085 = vsub.s32 0, %v1084
    %v1086 = vrot.slane %v1081, %v1085
    %v1087 = vlaneseq
    %v1088 = vshrl.u32 %v1087, 7
    %v1089 = vsub.s32 1, %v1088
    %v1090 = vrot.slane %v1081, %v1089
    %v1093 = vmul.f32 %v1023, %v1086
    %v1094 = vmul.f32 %v1024, %v1090
    %v1097 = vcombine.low %v1093, %v1094
    %v1099 = vunpack.c.l.s4 1966171168
    %v1100 = vunpack.c.0.s8 %v1099
    %v1101 = vlaneseq
    %v1102 = vshrl.u32 %v1101, 7
    %v1103 = vsub.s32 %v1100, %v1102
    %v1104 = vrot.slane %v1097, %v1103
    %v1106 = vunpack.c.l.s4 1966171168
    %v1107 = vunpack.c.0.s8 %v1106
    %v1108 = vlaneseq
    %v1109 = vshrl.u32 %v1108, 7
    %v1110 = vsub.s32 %v1107, %v1109
    %v1111 = vrot.slane %v1104, %v1110
    %v1113 = vsub.f32 %v1004, %v1111
    %v1114 = vmul.f32 %v979, %v1086
    %v1115 = vmul.f32 %v981, %v1090
    %v1116 = vmul.f32 %v985, %v1086
    %v1117 = vmul.f32 %v987, %v1090
    %v1118 = vmul.f32 %v991, %v1086
    %v1119 = vmul.f32 %v993, %v1090
    %v1120 = vmul.f32 %v997, %v1086
    %v1121 = vmul.f32 %v999, %v1090
    %v1123 = vlaneseq
    %v1124 = vshrl.u32 %v1123, 7
    %v1125 = vsub.s32 0, %v1124
    %v1126 = vrot.slane %v1113, %v1125
    %v1127 = vlaneseq
    %v1128 = vshrl.u32 %v1127, 7
    %v1129 = vsub.s32 1, %v1128
    %v1130 = vrot.slane %v1113, %v1129
    %v1133 = vadd.f32 %v1114, %v1126
    %v1134 = vadd.f32 %v1115, %v1130
    %v1135 = vadd.f32 %v1116, %v1126
    %v1136 = vadd.f32 %v1117, %v1130
    %v1137 = vadd.f32 %v1118, %v1126
    %v1138 = vadd.f32 %v1119, %v1130
    %v1139 = vadd.f32 %v1120, %v1126
    %v1140 = vadd.f32 %v1121, %v1130
    %v1141 = vmax.f32 %v1133, 0.0
    %v1142 = vmax.f32 %v1134, 0.0
    %v1143 = vmax.f32 %v1135, 0.0
    %v1144 = vmax.f32 %v1136, 0.0
    %v1145 = vmax.f32 %v1137, 0.0
    %v1146 = vmax.f32 %v1138, 0.0
    %v1147 = vmax.f32 %v1139, 0.0
    %v1148 = vmax.f32 %v1140, 0.0
    %s1149 = scalar_lea.vmem [#allocation8], 256
    %v1150 = vld [vmem:[%s1149] sm:$0xff]
    %v1151 = vld [vmem:[%s1149 + $0x8] sm:$0xff]
    %v1152 = vld [vmem:[%s1149 + $0x10] sm:$0xff]
    %v1153 = vld [vmem:[%s1149 + $0x18] sm:$0xff]
    %v1154 = vld [vmem:[%s1149 + $0x20] sm:$0xff]
    %v1155 = vld [vmem:[%s1149 + $0x28] sm:$0xff]
    %v1156 = vld [vmem:[%s1149 + $0x30] sm:$0xff]
    %v1157 = vld [vmem:[%s1149 + $0x38] sm:$0xff]
    %v1158 = vld [vmem:[%s1149 + $0x40] sm:$0xff]
    %v1159 = vld [vmem:[%s1149 + $0x48] sm:$0xff]
    %v1160 = vld [vmem:[%s1149 + $0x50] sm:$0xff]
    %v1161 = vld [vmem:[%s1149 + $0x58] sm:$0xff]
    %v1162 = vld [vmem:[%s1149 + $0x60] sm:$0xff]
    %v1163 = vld [vmem:[%s1149 + $0x68] sm:$0xff]
    %v1164 = vld [vmem:[%s1149 + $0x70] sm:$0xff]
    %v1165 = vld [vmem:[%s1149 + $0x78] sm:$0xff]
    %v1166 = vld [vmem:[%s1149 + $0x80] sm:$0xff]
    %v1167 = vld [vmem:[%s1149 + $0x88] sm:$0xff]
    %v1168 = vld [vmem:[%s1149 + $0x90] sm:$0xff]
    %v1169 = vld [vmem:[%s1149 + $0x98] sm:$0xff]
    %v1170 = vld [vmem:[%s1149 + $0xa0] sm:$0xff]
    %v1171 = vld [vmem:[%s1149 + $0xa8] sm:$0xff]
    %v1172 = vld [vmem:[%s1149 + $0xb0] sm:$0xff]
    %v1173 = vld [vmem:[%s1149 + $0xb8] sm:$0xff]
    %v1174 = vld [vmem:[%s1149 + $0xc0] sm:$0xff]
    %v1175 = vld [vmem:[%s1149 + $0xc8] sm:$0xff]
    %v1176 = vld [vmem:[%s1149 + $0xd0] sm:$0xff]
    %v1177 = vld [vmem:[%s1149 + $0xd8] sm:$0xff]
    %v1178 = vld [vmem:[%s1149 + $0xe0] sm:$0xff]
    %v1179 = vld [vmem:[%s1149 + $0xe8] sm:$0xff]
    %v1180 = vld [vmem:[%s1149 + $0xf0] sm:$0xff]
    %v1181 = vld [vmem:[%s1149 + $0xf8] sm:$0xff]
    %1182 = vmatprep.subr.mxu0 0.0
    %1183 = vmatpush1.msra.mxu0 %v1165
    %1184 = vmatprep.subr.mxu0 0.0
    %1185 = vmatpush1.msra.mxu0 %v1164
    %1186 = vmatprep.subr.mxu0 0.0
    %1187 = vmatpush1.msra.mxu0 %v1163
    %1188 = vmatprep.subr.mxu0 0.0
    %1189 = vmatpush1.msra.mxu0 %v1162
    %1190 = vmatprep.subr.mxu0 0.0
    %1191 = vmatpush1.msra.mxu0 %v1161
    %1192 = vmatprep.subr.mxu0 0.0
    %1193 = vmatpush1.msra.mxu0 %v1160
    %1194 = vmatprep.subr.mxu0 0.0
    %1195 = vmatpush1.msra.mxu0 %v1159
    %1196 = vmatprep.subr.mxu0 0.0
    %1197 = vmatpush1.msra.mxu0 %v1158
    %1198 = vmatprep.subr.mxu0 0.0
    %1199 = vmatpush1.msra.mxu0 %v1157
    %1200 = vmatprep.subr.mxu0 0.0
    %1201 = vmatpush1.msra.mxu0 %v1156
    %1202 = vmatprep.subr.mxu0 0.0
    %1203 = vmatpush1.msra.mxu0 %v1155
    %1204 = vmatprep.subr.mxu0 0.0
    %1205 = vmatpush1.msra.mxu0 %v1154
    %1206 = vmatprep.subr.mxu0 0.0
    %1207 = vmatpush1.msra.mxu0 %v1153
    %1208 = vmatprep.subr.mxu0 0.0
    %1209 = vmatpush1.msra.mxu0 %v1152
    %1210 = vmatprep.subr.mxu0 0.0
    %1211 = vmatpush1.msra.mxu0 %v1151
    %1212 = vmatprep.subr.mxu0 0.0
    %1213 = vmatpush1.msra.mxu0 %v1150
    %1214 = vmatprep.subr.mxu0 0.0
    %1215 = vmatpush2.msra.mxu0 %v1181
    %1216 = vmatprep.subr.mxu0 0.0
    %1217 = vmatpush2.msra.mxu0 %v1180
    %1218 = vmatprep.subr.mxu0 0.0
    %1219 = vmatpush2.msra.mxu0 %v1179
    %1220 = vmatprep.subr.mxu0 0.0
    %1221 = vmatpush2.msra.mxu0 %v1178
    %1222 = vmatprep.subr.mxu0 0.0
    %1223 = vmatpush2.msra.mxu0 %v1177
    %1224 = vmatprep.subr.mxu0 0.0
    %1225 = vmatpush2.msra.mxu0 %v1176
    %1226 = vmatprep.subr.mxu0 0.0
    %1227 = vmatpush2.msra.mxu0 %v1175
    %1228 = vmatprep.subr.mxu0 0.0
    %1229 = vmatpush2.msra.mxu0 %v1174
    %1230 = vmatprep.subr.mxu0 0.0
    %1231 = vmatpush2.msra.mxu0 %v1173
    %1232 = vmatprep.subr.mxu0 0.0
    %1233 = vmatpush2.msra.mxu0 %v1172
    %1234 = vmatprep.subr.mxu0 0.0
    %1235 = vmatpush2.msra.mxu0 %v1171
    %1236 = vmatprep.subr.mxu0 0.0
    %1237 = vmatpush2.msra.mxu0 %v1170
    %1238 = vmatprep.subr.mxu0 0.0
    %1239 = vmatpush2.msra.mxu0 %v1169
    %1240 = vmatprep.subr.mxu0 0.0
    %1241 = vmatpush2.msra.mxu0 %v1168
    %1242 = vmatprep.subr.mxu0 0.0
    %1243 = vmatpush2.msra.mxu0 %v1167
    %1244 = vmatprep.subr.mxu0 0.0
    %1245 = vmatpush2.msra.mxu0 %v1166
    %1246 = vmatprep.mubr.f32.mxu0 %v1142
    %1247 = vmatmul.mubr.f32.gmra.mxu0 %v1141
    %v1248 = vpop.f32.mrf.mxu0
    %v1249 = vadd.f32 0.0, %v1248
    %v1250 = vpop.f32.mrf.mxu0
    %1251 = vmatprep.mubr.f32.mxu0 %v1144
    %1252 = vmatmul.mubr.f32.gmra.mxu0 %v1143
    %v1253 = vpop.f32.mrf.mxu0
    %v1254 = vadd.f32 0.0, %v1253
    %v1255 = vpop.f32.mrf.mxu0
    %1256 = vmatprep.mubr.f32.mxu0 %v1146
    %1257 = vmatmul.mubr.f32.gmra.mxu0 %v1145
    %v1258 = vpop.f32.mrf.mxu0
    %v1259 = vadd.f32 0.0, %v1258
    %v1260 = vpop.f32.mrf.mxu0
    %1261 = vmatprep.mubr.f32.mxu0 %v1148
    %1262 = vmatmul.mubr.f32.gmra.mxu0 %v1147
    %v1263 = vpop.f32.mrf.mxu0
    %v1264 = vadd.f32 0.0, %v1263
    %v1265 = vpop.f32.mrf.mxu0
    %1266 = vdwg.mxu0
    %s1267 = scalar_lea.vmem %s8, 1
    %v1268 = vld [vmem:[%s1267] sm:$0x1]
    %s1269 = scalar_lea.vmem %s9, 1
    %v1270 = vld [vmem:[%s1269] sm:$0x1]
    %v1271 = vadd.f32 %v1249, %v1254
    %v1272 = vadd.f32 %v1271, %v1259
    %v1273 = vadd.f32 %v1272, %v1264
    %v1274 = vrot.slane %v1273, 4
    %v1275 = vadd.f32 %v1273, %v1274
    %v1276 = vrot.slane %v1275, 2
    %v1277 = vadd.f32 %v1275, %v1276
    %v1278 = vrot.slane %v1277, 1
    %v1279 = vadd.f32 %v1277, %v1278
    %v1280 = vmul.f32 %v1279, 0.03125
    %v1281 = vmul.f32 %v1249, %v1249
    %v1282 = vmul.f32 %v1254, %v1254
    %v1283 = vmul.f32 %v1259, %v1259
    %v1284 = vmul.f32 %v1264, %v1264
    %v1285 = vadd.f32 %v1281, %v1282
    %v1286 = vadd.f32 %v1285, %v1283
    %v1287 = vadd.f32 %v1286, %v1284
    %v1288 = vrot.slane %v1287, 4
    %v1289 = vadd.f32 %v1287, %v1288
    %v1290 = vrot.slane %v1289, 2
    %v1291 = vadd.f32 %v1289, %v1290
    %v1292 = vrot.slane %v1291, 1
    %v1293 = vadd.f32 %v1291, %v1292
    %v1294 = vmul.f32 %v1293, 0.03125
    %v1295 = vmul.f32 %v1280, %v1280
    %v1296 = vsub.f32 %v1294, %v1295
    %v1297 = vmax.f32 %v1296, 0.0
    %v1298 = vadd.f32 %v1297, 1e-05
    %v1299 = vrsqrt.pop %v1298
    %v1300 = vmul.f32 %v1268, %v1299
    %v1301 = vmul.f32 %v1280, %v1300
    %v1302 = vsub.f32 %v1270, %v1301
    %v1304 = vlaneseq
    %v1305 = vshrl.u32 %v1304, 7
    %v1306 = vsub.s32 0, %v1305
    %v1307 = vrot.slane %v1300, %v1306
    %v1309 = vmul.f32 %v1249, %v1307
    %v1310 = vmul.f32 %v1254, %v1307
    %v1311 = vmul.f32 %v1259, %v1307
    %v1312 = vmul.f32 %v1264, %v1307
    %v1314 = vlaneseq
    %v1315 = vshrl.u32 %v1314, 7
    %v1316 = vsub.s32 0, %v1315
    %v1317 = vrot.slane %v1302, %v1316
    %v1319 = vadd.f32 %v1309, %v1317
    %v1320 = vadd.f32 %v1310, %v1317
    %v1321 = vadd.f32 %v1311, %v1317
    %v1322 = vadd.f32 %v1312, %v1317
    %v1323 = vmax.f32 %v1319, 0.0
    %v1324 = vmax.f32 %v1320, 0.0
    %v1325 = vmax.f32 %v1321, 0.0
    %v1326 = vmax.f32 %v1322, 0.0
    %1327 = vmatprep.subr.mxu0 0.0
    %1328 = vmatpush1.msra.mxu0 0.0
    %1329 = vmatprep.subr.mxu0 0.0
    %1330 = vmatpush1.msra.mxu0 0.0
    %1331 = vmatprep.subr.mxu0 0.0
    %1332 = vmatpush1.msra.mxu0 0.0
    %1333 = vmatprep.subr.mxu0 0.0
    %1334 = vmatpush1.msra.mxu0 0.0
    %1335 = vmatprep.subr.mxu0 0.0
    %1336 = vmatpush1.msra.mxu0 0.0
    %1337 = vmatprep.subr.mxu0 0.0
    %1338 = vmatpush1.msra.mxu0 0.0
    %1339 = vmatprep.subr.mxu0 0.0
    %1340 = vmatpush1.msra.mxu0 0.0
    %1341 = vmatprep.subr.mxu0 0.0
    %1342 = vmatpush1.msra.mxu0 0.0
    %1343 = vmatprep.subr.mxu0 0.0
    %1344 = vmatpush1.msra.mxu0 0.0
    %1345 = vmatprep.subr.mxu0 0.0
    %1346 = vmatpush1.msra.mxu0 0.0
    %1347 = vmatprep.subr.mxu0 0.0
    %1348 = vmatpush1.msra.mxu0 0.0
    %1349 = vmatprep.subr.mxu0 0.0
    %1350 = vmatpush1.msra.mxu0 0.0
    %1351 = vmatprep.subr.mxu0 0.0
    %1352 = vmatpush1.msra.mxu0 %v1326
    %1353 = vmatprep.subr.mxu0 0.0
    %1354 = vmatpush1.msra.mxu0 %v1325
    %1355 = vmatprep.subr.mxu0 0.0
    %1356 = vmatpush1.msra.mxu0 %v1324
    %1357 = vmatprep.subr.mxu0 0.0
    %1358 = vmatpush1.msra.mxu0 %v1323
    %1359 = vmatprep.subr.mxu0 0.0
    %1360 = vmatpush2.msra.mxu0 0.0
    %1361 = vmatprep.subr.mxu0 0.0
    %1362 = vmatpush2.msra.mxu0 0.0
    %1363 = vmatprep.subr.mxu0 0.0
    %1364 = vmatpush2.msra.mxu0 0.0
    %1365 = vmatprep.subr.mxu0 0.0
    %1366 = vmatpush2.msra.mxu0 0.0
    %1367 = vmatprep.subr.mxu0 0.0
    %1368 = vmatpush2.msra.mxu0 0.0
    %1369 = vmatprep.subr.mxu0 0.0
    %1370 = vmatpush2.msra.mxu0 0.0
    %1371 = vmatprep.subr.mxu0 0.0
    %1372 = vmatpush2.msra.mxu0 0.0
    %1373 = vmatprep.subr.mxu0 0.0
    %1374 = vmatpush2.msra.mxu0 0.0
    %1375 = vmatprep.subr.mxu0 0.0
    %1376 = vmatpush2.msra.mxu0 0.0
    %1377 = vmatprep.subr.mxu0 0.0
    %1378 = vmatpush2.msra.mxu0 0.0
    %1379 = vmatprep.subr.mxu0 0.0
    %1380 = vmatpush2.msra.mxu0 0.0
    %1381 = vmatprep.subr.mxu0 0.0
    %1382 = vmatpush2.msra.mxu0 0.0
    %1383 = vmatprep.subr.mxu0 0.0
    %1384 = vmatpush2.msra.mxu0 0.0
    %1385 = vmatprep.subr.mxu0 0.0
    %1386 = vmatpush2.msra.mxu0 0.0
    %1387 = vmatprep.subr.mxu0 0.0
    %1388 = vmatpush2.msra.mxu0 0.0
    %1389 = vmatprep.subr.mxu0 0.0
    %1390 = vmatpush2.msra.mxu0 0.0
    %1391 = vmatprep.mubr.f32.mxu0 0.0
    %1392 = vmatmul.mubr.f32.gmra.mxu0 %v248
    %v1393 = vpop.f32.mrf.mxu0
    %v1394 = vadd.f32 0.0, %v1393
    %v1395 = vpop.f32.mrf.mxu0
    %1396 = vmatprep.mubr.f32.mxu0 0.0
    %1397 = vmatmul.mubr.f32.gmra.mxu0 %v251
    %v1398 = vpop.f32.mrf.mxu0
    %v1399 = vadd.f32 0.0, %v1398
    %v1400 = vpop.f32.mrf.mxu0
    %1401 = vmatprep.mubr.f32.mxu0 0.0
    %1402 = vmatmul.mubr.f32.gmra.mxu0 %v254
    %v1403 = vpop.f32.mrf.mxu0
    %v1404 = vadd.f32 0.0, %v1403
    %v1405 = vpop.f32.mrf.mxu0
    %1406 = vmatprep.mubr.f32.mxu0 0.0
    %1407 = vmatmul.mubr.f32.gmra.mxu0 %v257
    %v1408 = vpop.f32.mrf.mxu0
    %v1409 = vadd.f32 0.0, %v1408
    %v1410 = vpop.f32.mrf.mxu0
    %1411 = vdwg.mxu0
    %v1412 = vadd.f32 %v1323, %v1394
    %v1413 = vadd.f32 %v1324, %v1399
    %v1414 = vadd.f32 %v1325, %v1404
    %v1415 = vadd.f32 %v1326, %v1409
    %s1416 = scalar_lea.vmem [#allocation5], 512
    %v1417 = vld [vmem:[%s1416] sm:$0xff]
    %v1418 = vld [vmem:[%s1416 + $0x8] sm:$0xff]
    %v1419 = vld [vmem:[%s1416 + $0x10] sm:$0xff]
    %v1420 = vld [vmem:[%s1416 + $0x18] sm:$0xff]
    %v1421 = vld [vmem:[%s1416 + $0x20] sm:$0xff]
    %v1422 = vld [vmem:[%s1416 + $0x28] sm:$0xff]
    %v1423 = vld [vmem:[%s1416 + $0x30] sm:$0xff]
    %v1424 = vld [vmem:[%s1416 + $0x38] sm:$0xff]
    %v1425 = vld [vmem:[%s1416 + $0x40] sm:$0xff]
    %v1426 = vld [vmem:[%s1416 + $0x48] sm:$0xff]
    %v1427 = vld [vmem:[%s1416 + $0x50] sm:$0xff]
    %v1428 = vld [vmem:[%s1416 + $0x58] sm:$0xff]
    %v1429 = vld [vmem:[%s1416 + $0x60] sm:$0xff]
    %v1430 = vld [vmem:[%s1416 + $0x68] sm:$0xff]
    %v1431 = vld [vmem:[%s1416 + $0x70] sm:$0xff]
    %v1432 = vld [vmem:[%s1416 + $0x78] sm:$0xff]
    %v1433 = vld [vmem:[%s1416 + $0x80] sm:$0xff]
    %v1434 = vld [vmem:[%s1416 + $0x88] sm:$0xff]
    %v1435 = vld [vmem:[%s1416 + $0x90] sm:$0xff]
    %v1436 = vld [vmem:[%s1416 + $0x98] sm:$0xff]
    %v1437 = vld [vmem:[%s1416 + $0xa0] sm:$0xff]
    %v1438 = vld [vmem:[%s1416 + $0xa8] sm:$0xff]
    %v1439 = vld [vmem:[%s1416 + $0xb0] sm:$0xff]
    %v1440 = vld [vmem:[%s1416 + $0xb8] sm:$0xff]
    %v1441 = vld [vmem:[%s1416 + $0xc0] sm:$0xff]
    %v1442 = vld [vmem:[%s1416 + $0xc8] sm:$0xff]
    %v1443 = vld [vmem:[%s1416 + $0xd0] sm:$0xff]
    %v1444 = vld [vmem:[%s1416 + $0xd8] sm:$0xff]
    %v1445 = vld [vmem:[%s1416 + $0xe0] sm:$0xff]
    %v1446 = vld [vmem:[%s1416 + $0xe8] sm:$0xff]
    %v1447 = vld [vmem:[%s1416 + $0xf0] sm:$0xff]
    %v1448 = vld [vmem:[%s1416 + $0xf8] sm:$0xff]
    %1449 = vmatprep.subr.mxu0 %v1448
    %1450 = vmatpush1.msra.mxu0 %v1447
    %1451 = vmatprep.subr.mxu0 %v1446
    %1452 = vmatpush1.msra.mxu0 %v1445
    %1453 = vmatprep.subr.mxu0 %v1444
    %1454 = vmatpush1.msra.mxu0 %v1443
    %1455 = vmatprep.subr.mxu0 %v1442
    %1456 = vmatpush1.msra.mxu0 %v1441
    %1457 = vmatprep.subr.mxu0 %v1440
    %1458 = vmatpush1.msra.mxu0 %v1439
    %1459 = vmatprep.subr.mxu0 %v1438
    %1460 = vmatpush1.msra.mxu0 %v1437
    %1461 = vmatprep.subr.mxu0 %v1436
    %1462 = vmatpush1.msra.mxu0 %v1435
    %1463 = vmatprep.subr.mxu0 %v1434
    %1464 = vmatpush1.msra.mxu0 %v1433
    %1465 = vmatprep.subr.mxu0 %v1432
    %1466 = vmatpush1.msra.mxu0 %v1431
    %1467 = vmatprep.subr.mxu0 %v1430
    %1468 = vmatpush1.msra.mxu0 %v1429
    %1469 = vmatprep.subr.mxu0 %v1428
    %1470 = vmatpush1.msra.mxu0 %v1427
    %1471 = vmatprep.subr.mxu0 %v1426
    %1472 = vmatpush1.msra.mxu0 %v1425
    %1473 = vmatprep.subr.mxu0 %v1424
    %1474 = vmatpush1.msra.mxu0 %v1423
    %1475 = vmatprep.subr.mxu0 %v1422
    %1476 = vmatpush1.msra.mxu0 %v1421
    %1477 = vmatprep.subr.mxu0 %v1420
    %1478 = vmatpush1.msra.mxu0 %v1419
    %1479 = vmatprep.subr.mxu0 %v1418
    %1480 = vmatpush1.msra.mxu0 %v1417
    %1481 = vmatprep.subr.mxu0 0.0
    %1482 = vmatpush2.msra.mxu0 0.0
    %1483 = vmatprep.subr.mxu0 0.0
    %1484 = vmatpush2.msra.mxu0 0.0
    %1485 = vmatprep.subr.mxu0 0.0
    %1486 = vmatpush2.msra.mxu0 0.0
    %1487 = vmatprep.subr.mxu0 0.0
    %1488 = vmatpush2.msra.mxu0 0.0
    %1489 = vmatprep.subr.mxu0 0.0
    %1490 = vmatpush2.msra.mxu0 0.0
    %1491 = vmatprep.subr.mxu0 0.0
    %1492 = vmatpush2.msra.mxu0 0.0
    %1493 = vmatprep.subr.mxu0 0.0
    %1494 = vmatpush2.msra.mxu0 0.0
    %1495 = vmatprep.subr.mxu0 0.0
    %1496 = vmatpush2.msra.mxu0 0.0
    %1497 = vmatprep.subr.mxu0 0.0
    %1498 = vmatpush2.msra.mxu0 0.0
    %1499 = vmatprep.subr.mxu0 0.0
    %1500 = vmatpush2.msra.mxu0 0.0
    %1501 = vmatprep.subr.mxu0 0.0
    %1502 = vmatpush2.msra.mxu0 0.0
    %1503 = vmatprep.subr.mxu0 0.0
    %1504 = vmatpush2.msra.mxu0 0.0
    %1505 = vmatprep.subr.mxu0 0.0
    %1506 = vmatpush2.msra.mxu0 0.0
    %1507 = vmatprep.subr.mxu0 0.0
    %1508 = vmatpush2.msra.mxu0 0.0
    %1509 = vmatprep.subr.mxu0 0.0
    %1510 = vmatpush2.msra.mxu0 0.0
    %1511 = vmatprep.subr.mxu0 0.0
    %1512 = vmatpush2.msra.mxu0 0.0
    %1513 = vmatprep.mubr.f32.mxu0 0.0
    %1514 = vmatmul.mubr.f32.gmra.mxu0 %v1412
    %v1515 = vpop.f32.mrf.mxu0
    %v1516 = vadd.f32 0.0, %v1515
    %v1517 = vpop.f32.mrf.mxu0
    %v1518 = vadd.f32 0.0, %v1517
    %1519 = vmatprep.mubr.f32.mxu0 0.0
    %1520 = vmatmul.mubr.f32.gmra.mxu0 %v1413
    %v1521 = vpop.f32.mrf.mxu0
    %v1522 = vadd.f32 0.0, %v1521
    %v1523 = vpop.f32.mrf.mxu0
    %v1524 = vadd.f32 0.0, %v1523
    %1525 = vmatprep.mubr.f32.mxu0 0.0
    %1526 = vmatmul.mubr.f32.gmra.mxu0 %v1414
    %v1527 = vpop.f32.mrf.mxu0
    %v1528 = vadd.f32 0.0, %v1527
    %v1529 = vpop.f32.mrf.mxu0
    %v1530 = vadd.f32 0.0, %v1529
    %1531 = vmatprep.mubr.f32.mxu0 0.0
    %1532 = vmatmul.mubr.f32.gmra.mxu0 %v1415
    %v1533 = vpop.f32.mrf.mxu0
    %v1534 = vadd.f32 0.0, %v1533
    %v1535 = vpop.f32.mrf.mxu0
    %v1536 = vadd.f32 0.0, %v1535
    %1537 = vdwg.mxu0
    %s1538 = scalar_lea.vmem %s5, 4
    %v1539 = vld [vmem:[%s1538] sm:$0x3]
    %s1540 = scalar_lea.vmem [#allocation7], 4
    %v1541 = vld [vmem:[%s1540] sm:$0x3]
    %v1542 = vadd.f32 %v1516, %v1522
    %v1543 = vadd.f32 %v1542, %v1528
    %v1544 = vadd.f32 %v1543, %v1534
    %v1545 = vrot.slane %v1544, 4
    %v1546 = vadd.f32 %v1544, %v1545
    %v1547 = vrot.slane %v1546, 2
    %v1548 = vadd.f32 %v1546, %v1547
    %v1549 = vrot.slane %v1548, 1
    %v1550 = vadd.f32 %v1548, %v1549
    %v1551 = vadd.f32 %v1518, %v1524
    %v1552 = vadd.f32 %v1551, %v1530
    %v1553 = vadd.f32 %v1552, %v1536
    %v1554 = vrot.slane %v1553, 4
    %v1555 = vadd.f32 %v1553, %v1554
    %v1556 = vrot.slane %v1555, 2
    %v1557 = vadd.f32 %v1555, %v1556
    %v1558 = vrot.slane %v1557, 1
    %v1559 = vadd.f32 %v1557, %v1558
    %v1560 = vmul.f32 %v1550, 0.03125
    %v1561 = vmul.f32 %v1559, 0.03125
    %v1562 = vmul.f32 %v1516, %v1516
    %v1563 = vmul.f32 %v1518, %v1518
    %v1564 = vmul.f32 %v1522, %v1522
    %v1565 = vmul.f32 %v1524, %v1524
    %v1566 = vmul.f32 %v1528, %v1528
    %v1567 = vmul.f32 %v1530, %v1530
    %v1568 = vmul.f32 %v1534, %v1534
    %v1569 = vmul.f32 %v1536, %v1536
    %v1570 = vadd.f32 %v1562, %v1564
    %v1571 = vadd.f32 %v1570, %v1566
    %v1572 = vadd.f32 %v1571, %v1568
    %v1573 = vrot.slane %v1572, 4
    %v1574 = vadd.f32 %v1572, %v1573
    %v1575 = vrot.slane %v1574, 2
    %v1576 = vadd.f32 %v1574, %v1575
    %v1577 = vrot.slane %v1576, 1
    %v1578 = vadd.f32 %v1576, %v1577
    %v1579 = vadd.f32 %v1563, %v1565
    %v1580 = vadd.f32 %v1579, %v1567
    %v1581 = vadd.f32 %v1580, %v1569
    %v1582 = vrot.slane %v1581, 4
    %v1583 = vadd.f32 %v1581, %v1582
    %v1584 = vrot.slane %v1583, 2
    %v1585 = vadd.f32 %v1583, %v1584
    %v1586 = vrot.slane %v1585, 1
    %v1587 = vadd.f32 %v1585, %v1586
    %v1588 = vmul.f32 %v1578, 0.03125
    %v1589 = vmul.f32 %v1587, 0.03125
    %v1590 = vmul.f32 %v1560, %v1560
    %v1591 = vmul.f32 %v1561, %v1561
    %v1592 = vsub.f32 %v1588, %v1590
    %v1593 = vsub.f32 %v1589, %v1591
    %v1594 = vmax.f32 %v1592, 0.0
    %v1595 = vmax.f32 %v1593, 0.0
    %v1596 = vadd.f32 %v1594, 1e-05
    %v1597 = vadd.f32 %v1595, 1e-05
    %v1598 = vrsqrt.pop %v1596
    %v1599 = vrsqrt.pop %v1597
    %v1602 = vcombine.low %v1598, %v1599
    %v1604 = vunpack.c.l.s4 1966171168
    %v1605 = vunpack.c.0.s8 %v1604
    %v1606 = vlaneseq
    %v1607 = vshrl.u32 %v1606, 7
    %v1608 = vsub.s32 %v1605, %v1607
    %v1609 = vrot.slane %v1602, %v1608
    %v1611 = vunpack.c.l.s4 1966171168
    %v1612 = vunpack.c.0.s8 %v1611
    %v1613 = vlaneseq
    %v1614 = vshrl.u32 %v1613, 7
    %v1615 = vsub.s32 %v1612, %v1614
    %v1616 = vrot.slane %v1609, %v1615
    %v1618 = vmul.f32 %v1539, %v1616
    %v1620 = vlaneseq
    %v1621 = vshrl.u32 %v1620, 7
    %v1622 = vsub.s32 0, %v1621
    %v1623 = vrot.slane %v1618, %v1622
    %v1624 = vlaneseq
    %v1625 = vshrl.u32 %v1624, 7
    %v1626 = vsub.s32 1, %v1625
    %v1627 = vrot.slane %v1618, %v1626
    %v1630 = vmul.f32 %v1560, %v1623
    %v1631 = vmul.f32 %v1561, %v1627
    %v1634 = vcombine.low %v1630, %v1631
    %v1636 = vunpack.c.l.s4 1966171168
    %v1637 = vunpack.c.0.s8 %v1636
    %v1638 = vlaneseq
    %v1639 = vshrl.u32 %v1638, 7
    %v1640 = vsub.s32 %v1637, %v1639
    %v1641 = vrot.slane %v1634, %v1640
    %v1643 = vunpack.c.l.s4 1966171168
    %v1644 = vunpack.c.0.s8 %v1643
    %v1645 = vlaneseq
    %v1646 = vshrl.u32 %v1645, 7
    %v1647 = vsub.s32 %v1644, %v1646
    %v1648 = vrot.slane %v1641, %v1647
    %v1650 = vsub.f32 %v1541, %v1648
    %v1651 = vmul.f32 %v1516, %v1623
    %v1652 = vmul.f32 %v1518, %v1627
    %v1653 = vmul.f32 %v1522, %v1623
    %v1654 = vmul.f32 %v1524, %v1627
    %v1655 = vmul.f32 %v1528, %v1623
    %v1656 = vmul.f32 %v1530, %v1627
    %v1657 = vmul.f32 %v1534, %v1623
    %v1658 = vmul.f32 %v1536, %v1627
    %v1660 = vlaneseq
    %v1661 = vshrl.u32 %v1660, 7
    %v1662 = vsub.s32 0, %v1661
    %v1663 = vrot.slane %v1650, %v1662
    %v1664 = vlaneseq
    %v1665 = vshrl.u32 %v1664, 7
    %v1666 = vsub.s32 1, %v1665
    %v1667 = vrot.slane %v1650, %v1666
    %v1670 = vadd.f32 %v1651, %v1663
    %v1671 = vadd.f32 %v1652, %v1667
    %v1672 = vadd.f32 %v1653, %v1663
    %v1673 = vadd.f32 %v1654, %v1667
    %v1674 = vadd.f32 %v1655, %v1663
    %v1675 = vadd.f32 %v1656, %v1667
    %v1676 = vadd.f32 %v1657, %v1663
    %v1677 = vadd.f32 %v1658, %v1667
    %v1678 = vmax.f32 %v1670, 0.0
    %v1679 = vmax.f32 %v1671, 0.0
    %v1680 = vmax.f32 %v1672, 0.0
    %v1681 = vmax.f32 %v1673, 0.0
    %v1682 = vmax.f32 %v1674, 0.0
    %v1683 = vmax.f32 %v1675, 0.0
    %v1684 = vmax.f32 %v1676, 0.0
    %v1685 = vmax.f32 %v1677, 0.0
    %s1686 = scalar_lea.vmem [#allocation8], 512
    %v1687 = vld [vmem:[%s1686] sm:$0xff]
    %v1688 = vld [vmem:[%s1686 + $0x8] sm:$0xff]
    %v1689 = vld [vmem:[%s1686 + $0x10] sm:$0xff]
    %v1690 = vld [vmem:[%s1686 + $0x18] sm:$0xff]
    %v1691 = vld [vmem:[%s1686 + $0x20] sm:$0xff]
    %v1692 = vld [vmem:[%s1686 + $0x28] sm:$0xff]
    %v1693 = vld [vmem:[%s1686 + $0x30] sm:$0xff]
    %v1694 = vld [vmem:[%s1686 + $0x38] sm:$0xff]
    %v1695 = vld [vmem:[%s1686 + $0x40] sm:$0xff]
    %v1696 = vld [vmem:[%s1686 + $0x48] sm:$0xff]
    %v1697 = vld [vmem:[%s1686 + $0x50] sm:$0xff]
    %v1698 = vld [vmem:[%s1686 + $0x58] sm:$0xff]
    %v1699 = vld [vmem:[%s1686 + $0x60] sm:$0xff]
    %v1700 = vld [vmem:[%s1686 + $0x68] sm:$0xff]
    %v1701 = vld [vmem:[%s1686 + $0x70] sm:$0xff]
    %v1702 = vld [vmem:[%s1686 + $0x78] sm:$0xff]
    %v1703 = vld [vmem:[%s1686 + $0x80] sm:$0xff]
    %v1704 = vld [vmem:[%s1686 + $0x88] sm:$0xff]
    %v1705 = vld [vmem:[%s1686 + $0x90] sm:$0xff]
    %v1706 = vld [vmem:[%s1686 + $0x98] sm:$0xff]
    %v1707 = vld [vmem:[%s1686 + $0xa0] sm:$0xff]
    %v1708 = vld [vmem:[%s1686 + $0xa8] sm:$0xff]
    %v1709 = vld [vmem:[%s1686 + $0xb0] sm:$0xff]
    %v1710 = vld [vmem:[%s1686 + $0xb8] sm:$0xff]
    %v1711 = vld [vmem:[%s1686 + $0xc0] sm:$0xff]
    %v1712 = vld [vmem:[%s1686 + $0xc8] sm:$0xff]
    %v1713 = vld [vmem:[%s1686 + $0xd0] sm:$0xff]
    %v1714 = vld [vmem:[%s1686 + $0xd8] sm:$0xff]
    %v1715 = vld [vmem:[%s1686 + $0xe0] sm:$0xff]
    %v1716 = vld [vmem:[%s1686 + $0xe8] sm:$0xff]
    %v1717 = vld [vmem:[%s1686 + $0xf0] sm:$0xff]
    %v1718 = vld [vmem:[%s1686 + $0xf8] sm:$0xff]
    %1719 = vmatprep.subr.mxu0 0.0
    %1720 = vmatpush1.msra.mxu0 %v1702
    %1721 = vmatprep.subr.mxu0 0.0
    %1722 = vmatpush1.msra.mxu0 %v1701
    %1723 = vmatprep.subr.mxu0 0.0
    %1724 = vmatpush1.msra.mxu0 %v1700
    %1725 = vmatprep.subr.mxu0 0.0
    %1726 = vmatpush1.msra.mxu0 %v1699
    %1727 = vmatprep.subr.mxu0 0.0
    %1728 = vmatpush1.msra.mxu0 %v1698
    %1729 = vmatprep.subr.mxu0 0.0
    %1730 = vmatpush1.msra.mxu0 %v1697
    %1731 = vmatprep.subr.mxu0 0.0
    %1732 = vmatpush1.msra.mxu0 %v1696
    %1733 = vmatprep.subr.mxu0 0.0
    %1734 = vmatpush1.msra.mxu0 %v1695
    %1735 = vmatprep.subr.mxu0 0.0
    %1736 = vmatpush1.msra.mxu0 %v1694
    %1737 = vmatprep.subr.mxu0 0.0
    %1738 = vmatpush1.msra.mxu0 %v1693
    %1739 = vmatprep.subr.mxu0 0.0
    %1740 = vmatpush1.msra.mxu0 %v1692
    %1741 = vmatprep.subr.mxu0 0.0
    %1742 = vmatpush1.msra.mxu0 %v1691
    %1743 = vmatprep.subr.mxu0 0.0
    %1744 = vmatpush1.msra.mxu0 %v1690
    %1745 = vmatprep.subr.mxu0 0.0
    %1746 = vmatpush1.msra.mxu0 %v1689
    %1747 = vmatprep.subr.mxu0 0.0
    %1748 = vmatpush1.msra.mxu0 %v1688
    %1749 = vmatprep.subr.mxu0 0.0
    %1750 = vmatpush1.msra.mxu0 %v1687
    %1751 = vmatprep.subr.mxu0 0.0
    %1752 = vmatpush2.msra.mxu0 %v1718
    %1753 = vmatprep.subr.mxu0 0.0
    %1754 = vmatpush2.msra.mxu0 %v1717
    %1755 = vmatprep.subr.mxu0 0.0
    %1756 = vmatpush2.msra.mxu0 %v1716
    %1757 = vmatprep.subr.mxu0 0.0
    %1758 = vmatpush2.msra.mxu0 %v1715
    %1759 = vmatprep.subr.mxu0 0.0
    %1760 = vmatpush2.msra.mxu0 %v1714
    %1761 = vmatprep.subr.mxu0 0.0
    %1762 = vmatpush2.msra.mxu0 %v1713
    %1763 = vmatprep.subr.mxu0 0.0
    %1764 = vmatpush2.msra.mxu0 %v1712
    %1765 = vmatprep.subr.mxu0 0.0
    %1766 = vmatpush2.msra.mxu0 %v1711
    %1767 = vmatprep.subr.mxu0 0.0
    %1768 = vmatpush2.msra.mxu0 %v1710
    %1769 = vmatprep.subr.mxu0 0.0
    %1770 = vmatpush2.msra.mxu0 %v1709
    %1771 = vmatprep.subr.mxu0 0.0
    %1772 = vmatpush2.msra.mxu0 %v1708
    %1773 = vmatprep.subr.mxu0 0.0
    %1774 = vmatpush2.msra.mxu0 %v1707
    %1775 = vmatprep.subr.mxu0 0.0
    %1776 = vmatpush2.msra.mxu0 %v1706
    %1777 = vmatprep.subr.mxu0 0.0
    %1778 = vmatpush2.msra.mxu0 %v1705
    %1779 = vmatprep.subr.mxu0 0.0
    %1780 = vmatpush2.msra.mxu0 %v1704
    %1781 = vmatprep.subr.mxu0 0.0
    %1782 = vmatpush2.msra.mxu0 %v1703
    %1783 = vmatprep.mubr.f32.mxu0 %v1679
    %1784 = vmatmul.mubr.f32.gmra.mxu0 %v1678
    %v1785 = vpop.f32.mrf.mxu0
    %v1786 = vadd.f32 0.0, %v1785
    %v1787 = vpop.f32.mrf.mxu0
    %1788 = vmatprep.mubr.f32.mxu0 %v1681
    %1789 = vmatmul.mubr.f32.gmra.mxu0 %v1680
    %v1790 = vpop.f32.mrf.mxu0
    %v1791 = vadd.f32 0.0, %v1790
    %v1792 = vpop.f32.mrf.mxu0
    %1793 = vmatprep.mubr.f32.mxu0 %v1683
    %1794 = vmatmul.mubr.f32.gmra.mxu0 %v1682
    %v1795 = vpop.f32.mrf.mxu0
    %v1796 = vadd.f32 0.0, %v1795
    %v1797 = vpop.f32.mrf.mxu0
    %1798 = vmatprep.mubr.f32.mxu0 %v1685
    %1799 = vmatmul.mubr.f32.gmra.mxu0 %v1684
    %v1800 = vpop.f32.mrf.mxu0
    %v1801 = vadd.f32 0.0, %v1800
    %v1802 = vpop.f32.mrf.mxu0
    %1803 = vdwg.mxu0
    %s1804 = scalar_lea.vmem %s8, 2
    %v1805 = vld [vmem:[%s1804] sm:$0x1]
    %s1806 = scalar_lea.vmem %s9, 2
    %v1807 = vld [vmem:[%s1806] sm:$0x1]
    %v1808 = vadd.f32 %v1786, %v1791
    %v1809 = vadd.f32 %v1808, %v1796
    %v1810 = vadd.f32 %v1809, %v1801
    %v1811 = vrot.slane %v1810, 4
    %v1812 = vadd.f32 %v1810, %v1811
    %v1813 = vrot.slane %v1812, 2
    %v1814 = vadd.f32 %v1812, %v1813
    %v1815 = vrot.slane %v1814, 1
    %v1816 = vadd.f32 %v1814, %v1815
    %v1817 = vmul.f32 %v1816, 0.03125
    %v1818 = vmul.f32 %v1786, %v1786
    %v1819 = vmul.f32 %v1791, %v1791
    %v1820 = vmul.f32 %v1796, %v1796
    %v1821 = vmul.f32 %v1801, %v1801
    %v1822 = vadd.f32 %v1818, %v1819
    %v1823 = vadd.f32 %v1822, %v1820
    %v1824 = vadd.f32 %v1823, %v1821
    %v1825 = vrot.slane %v1824, 4
    %v1826 = vadd.f32 %v1824, %v1825
    %v1827 = vrot.slane %v1826, 2
    %v1828 = vadd.f32 %v1826, %v1827
    %v1829 = vrot.slane %v1828, 1
    %v1830 = vadd.f32 %v1828, %v1829
    %v1831 = vmul.f32 %v1830, 0.03125
    %v1832 = vmul.f32 %v1817, %v1817
    %v1833 = vsub.f32 %v1831, %v1832
    %v1834 = vmax.f32 %v1833, 0.0
    %v1835 = vadd.f32 %v1834, 1e-05
    %v1836 = vrsqrt.pop %v1835
    %v1837 = vmul.f32 %v1805, %v1836
    %v1838 = vmul.f32 %v1817, %v1837
    %v1839 = vsub.f32 %v1807, %v1838
    %v1841 = vlaneseq
    %v1842 = vshrl.u32 %v1841, 7
    %v1843 = vsub.s32 0, %v1842
    %v1844 = vrot.slane %v1837, %v1843
    %v1846 = vmul.f32 %v1786, %v1844
    %v1847 = vmul.f32 %v1791, %v1844
    %v1848 = vmul.f32 %v1796, %v1844
    %v1849 = vmul.f32 %v1801, %v1844
    %v1851 = vlaneseq
    %v1852 = vshrl.u32 %v1851, 7
    %v1853 = vsub.s32 0, %v1852
    %v1854 = vrot.slane %v1839, %v1853
    %v1856 = vadd.f32 %v1846, %v1854
    %v1857 = vadd.f32 %v1847, %v1854
    %v1858 = vadd.f32 %v1848, %v1854
    %v1859 = vadd.f32 %v1849, %v1854
    %1860 = vst [vmem:[#allocation14] sm:$0xff] %v1856
    %1861 = vst [vmem:[#allocation14 + $0x8] sm:$0xff] %v1857
    %1862 = vst [vmem:[#allocation14 + $0x10] sm:$0xff] %v1858
    %1863 = vst [vmem:[#allocation14 + $0x18] sm:$0xff] %v1859
    %v1864 = vld [vmem:[#allocation10] sm:$0xff]
    %v1865 = vld [vmem:[#allocation10 + $0x8] sm:$0xff]
    %v1866 = vld [vmem:[#allocation10 + $0x10] sm:$0xff]
    %v1867 = vld [vmem:[#allocation10 + $0x18] sm:$0xff]
    %v1868 = vld [vmem:[#allocation10 + $0x20] sm:$0xff]
    %v1869 = vld [vmem:[#allocation10 + $0x28] sm:$0xff]
    %v1870 = vld [vmem:[#allocation10 + $0x30] sm:$0xff]
    %v1871 = vld [vmem:[#allocation10 + $0x38] sm:$0xff]
    %v1872 = vld [vmem:[#allocation10 + $0x40] sm:$0xff]
    %v1873 = vld [vmem:[#allocation10 + $0x48] sm:$0xff]
    %v1874 = vld [vmem:[#allocation10 + $0x50] sm:$0xff]
    %v1875 = vld [vmem:[#allocation10 + $0x58] sm:$0xff]
    %v1876 = vld [vmem:[#allocation10 + $0x60] sm:$0xff]
    %v1877 = vld [vmem:[#allocation10 + $0x68] sm:$0xff]
    %v1878 = vld [vmem:[#allocation10 + $0x70] sm:$0xff]
    %v1879 = vld [vmem:[#allocation10 + $0x78] sm:$0xff]
    %v1880 = vld [vmem:[%s11] sm:$0x1]
    %v1882 = vlaneseq
    %v1883 = vshrl.u32 %v1882, 7
    %v1884 = vsub.s32 0, %v1883
    %v1885 = vrot.slane %v1880, %v1884
    %1887 = vmatprep.subr.mxu0 0.0
    %1888 = vmatpush1.msra.mxu0 %v1879
    %1889 = vmatprep.subr.mxu0 0.0
    %1890 = vmatpush1.msra.mxu0 %v1878
    %1891 = vmatprep.subr.mxu0 0.0
    %1892 = vmatpush1.msra.mxu0 %v1877
    %1893 = vmatprep.subr.mxu0 0.0
    %1894 = vmatpush1.msra.mxu0 %v1876
    %1895 = vmatprep.subr.mxu0 0.0
    %1896 = vmatpush1.msra.mxu0 %v1875
    %1897 = vmatprep.subr.mxu0 0.0
    %1898 = vmatpush1.msra.mxu0 %v1874
    %1899 = vmatprep.subr.mxu0 0.0
    %1900 = vmatpush1.msra.mxu0 %v1873
    %1901 = vmatprep.subr.mxu0 0.0
    %1902 = vmatpush1.msra.mxu0 %v1872
    %1903 = vmatprep.subr.mxu0 0.0
    %1904 = vmatpush1.msra.mxu0 %v1871
    %1905 = vmatprep.subr.mxu0 0.0
    %1906 = vmatpush1.msra.mxu0 %v1870
    %1907 = vmatprep.subr.mxu0 0.0
    %1908 = vmatpush1.msra.mxu0 %v1869
    %1909 = vmatprep.subr.mxu0 0.0
    %1910 = vmatpush1.msra.mxu0 %v1868
    %1911 = vmatprep.subr.mxu0 0.0
    %1912 = vmatpush1.msra.mxu0 %v1867
    %1913 = vmatprep.subr.mxu0 0.0
    %1914 = vmatpush1.msra.mxu0 %v1866
    %1915 = vmatprep.subr.mxu0 0.0
    %1916 = vmatpush1.msra.mxu0 %v1865
    %1917 = vmatprep.subr.mxu0 0.0
    %1918 = vmatpush1.msra.mxu0 %v1864
    %1919 = vmatprep.subr.mxu0 0.0
    %1920 = vmatpush2.msra.mxu0 0.0
    %1921 = vmatprep.subr.mxu0 0.0
    %1922 = vmatpush2.msra.mxu0 0.0
    %1923 = vmatprep.subr.mxu0 0.0
    %1924 = vmatpush2.msra.mxu0 0.0
    %1925 = vmatprep.subr.mxu0 0.0
    %1926 = vmatpush2.msra.mxu0 0.0
    %1927 = vmatprep.subr.mxu0 0.0
    %1928 = vmatpush2.msra.mxu0 0.0
    %1929 = vmatprep.subr.mxu0 0.0
    %1930 = vmatpush2.msra.mxu0 0.0
    %1931 = vmatprep.subr.mxu0 0.0
    %1932 = vmatpush2.msra.mxu0 0.0
    %1933 = vmatprep.subr.mxu0 0.0
    %1934 = vmatpush2.msra.mxu0 0.0
    %1935 = vmatprep.subr.mxu0 0.0
    %1936 = vmatpush2.msra.mxu0 0.0
    %1937 = vmatprep.subr.mxu0 0.0
    %1938 = vmatpush2.msra.mxu0 0.0
    %1939 = vmatprep.subr.mxu0 0.0
    %1940 = vmatpush2.msra.mxu0 0.0
    %1941 = vmatprep.subr.mxu0 0.0
    %1942 = vmatpush2.msra.mxu0 0.0
    %1943 = vmatprep.subr.mxu0 0.0
    %1944 = vmatpush2.msra.mxu0 0.0
    %1945 = vmatprep.subr.mxu0 0.0
    %1946 = vmatpush2.msra.mxu0 0.0
    %1947 = vmatprep.subr.mxu0 0.0
    %1948 = vmatpush2.msra.mxu0 0.0
    %1949 = vmatprep.subr.mxu0 0.0
    %1950 = vmatpush2.msra.mxu0 0.0
    %1951 = vmatprep.mubr.f32.mxu0 0.0
    %1952 = vmatmul.mubr.f32.gmra.mxu0 %v1856
    %v1953 = vpop.f32.mrf.mxu0
    %v1954 = vadd.f32 %v1885, %v1953
    %v1955 = vpop.f32.mrf.mxu0
    %1956 = vmatprep.mubr.f32.mxu0 0.0
    %1957 = vmatmul.mubr.f32.gmra.mxu0 %v1857
    %v1958 = vpop.f32.mrf.mxu0
    %v1959 = vadd.f32 %v1885, %v1958
    %v1960 = vpop.f32.mrf.mxu0
    %1961 = vmatprep.mubr.f32.mxu0 0.0
    %1962 = vmatmul.mubr.f32.gmra.mxu0 %v1858
    %v1963 = vpop.f32.mrf.mxu0
    %v1964 = vadd.f32 %v1885, %v1963
    %v1965 = vpop.f32.mrf.mxu0
    %1966 = vmatprep.mubr.f32.mxu0 0.0
    %1967 = vmatmul.mubr.f32.gmra.mxu0 %v1859
    %v1968 = vpop.f32.mrf.mxu0
    %v1969 = vadd.f32 %v1885, %v1968
    %v1970 = vpop.f32.mrf.mxu0
    %1971 = vdwg.mxu0
    %v1972 = vmax.f32 %v1954, 0.0
    %v1973 = vmax.f32 %v1959, 0.0
    %v1974 = vmax.f32 %v1964, 0.0
    %v1975 = vmax.f32 %v1969, 0.0
    %v1976 = vld [vmem:[#allocation11] sm:$0xff]
    %v1977 = vld [vmem:[#allocation11 + $0x8] sm:$0xff]
    %v1978 = vld [vmem:[#allocation11 + $0x10] sm:$0xff]
    %v1979 = vld [vmem:[#allocation11 + $0x18] sm:$0xff]
    %v1980 = vld [vmem:[#allocation11 + $0x20] sm:$0xff]
    %v1981 = vld [vmem:[#allocation11 + $0x28] sm:$0xff]
    %v1982 = vld [vmem:[#allocation11 + $0x30] sm:$0xff]
    %v1983 = vld [vmem:[#allocation11 + $0x38] sm:$0xff]
    %v1984 = vld [vmem:[#allocation11 + $0x40] sm:$0xff]
    %v1985 = vld [vmem:[#allocation11 + $0x48] sm:$0xff]
    %v1986 = vld [vmem:[#allocation11 + $0x50] sm:$0xff]
    %v1987 = vld [vmem:[#allocation11 + $0x58] sm:$0xff]
    %v1988 = vld [vmem:[#allocation11 + $0x60] sm:$0xff]
    %v1989 = vld [vmem:[#allocation11 + $0x68] sm:$0xff]
    %v1990 = vld [vmem:[#allocation11 + $0x70] sm:$0xff]
    %v1991 = vld [vmem:[#allocation11 + $0x78] sm:$0xff]
    %v1992 = vld [vmem:[%s13] sm:$0x1]
    %v1994 = vlaneseq
    %v1995 = vshrl.u32 %v1994, 7
    %v1996 = vsub.s32 0, %v1995
    %v1997 = vrot.slane %v1992, %v1996
    %1999 = vmatprep.subr.mxu0 0.0
    %2000 = vmatpush1.msra.mxu0 %v1991
    %2001 = vmatprep.subr.mxu0 0.0
    %2002 = vmatpush1.msra.mxu0 %v1990
    %2003 = vmatprep.subr.mxu0 0.0
    %2004 = vmatpush1.msra.mxu0 %v1989
    %2005 = vmatprep.subr.mxu0 0.0
    %2006 = vmatpush1.msra.mxu0 %v1988
    %2007 = vmatprep.subr.mxu0 0.0
    %2008 = vmatpush1.msra.mxu0 %v1987
    %2009 = vmatprep.subr.mxu0 0.0
    %2010 = vmatpush1.msra.mxu0 %v1986
    %2011 = vmatprep.subr.mxu0 0.0
    %2012 = vmatpush1.msra.mxu0 %v1985
    %2013 = vmatprep.subr.mxu0 0.0
    %2014 = vmatpush1.msra.mxu0 %v1984
    %2015 = vmatprep.subr.mxu0 0.0
    %2016 = vmatpush1.msra.mxu0 %v1983
    %2017 = vmatprep.subr.mxu0 0.0
    %2018 = vmatpush1.msra.mxu0 %v1982
    %2019 = vmatprep.subr.mxu0 0.0
    %2020 = vmatpush1.msra.mxu0 %v1981
    %2021 = vmatprep.subr.mxu0 0.0
    %2022 = vmatpush1.msra.mxu0 %v1980
    %2023 = vmatprep.subr.mxu0 0.0
    %2024 = vmatpush1.msra.mxu0 %v1979
    %2025 = vmatprep.subr.mxu0 0.0
    %2026 = vmatpush1.msra.mxu0 %v1978
    %2027 = vmatprep.subr.mxu0 0.0
    %2028 = vmatpush1.msra.mxu0 %v1977
    %2029 = vmatprep.subr.mxu0 0.0
    %2030 = vmatpush1.msra.mxu0 %v1976
    %2031 = vmatprep.subr.mxu0 0.0
    %2032 = vmatpush2.msra.mxu0 0.0
    %2033 = vmatprep.subr.mxu0 0.0
    %2034 = vmatpush2.msra.mxu0 0.0
    %2035 = vmatprep.subr.mxu0 0.0
    %2036 = vmatpush2.msra.mxu0 0.0
    %2037 = vmatprep.subr.mxu0 0.0
    %2038 = vmatpush2.msra.mxu0 0.0
    %2039 = vmatprep.subr.mxu0 0.0
    %2040 = vmatpush2.msra.mxu0 0.0
    %2041 = vmatprep.subr.mxu0 0.0
    %2042 = vmatpush2.msra.mxu0 0.0
    %2043 = vmatprep.subr.mxu0 0.0
    %2044 = vmatpush2.msra.mxu0 0.0
    %2045 = vmatprep.subr.mxu0 0.0
    %2046 = vmatpush2.msra.mxu0 0.0
    %2047 = vmatprep.subr.mxu0 0.0
    %2048 = vmatpush2.msra.mxu0 0.0
    %2049 = vmatprep.subr.mxu0 0.0
    %2050 = vmatpush2.msra.mxu0 0.0
    %2051 = vmatprep.subr.mxu0 0.0
    %2052 = vmatpush2.msra.mxu0 0.0
    %2053 = vmatprep.subr.mxu0 0.0
    %2054 = vmatpush2.msra.mxu0 0.0
    %2055 = vmatprep.subr.mxu0 0.0
    %2056 = vmatpush2.msra.mxu0 0.0
    %2057 = vmatprep.subr.mxu0 0.0
    %2058 = vmatpush2.msra.mxu0 0.0
    %2059 = vmatprep.subr.mxu0 0.0
    %2060 = vmatpush2.msra.mxu0 0.0
    %2061 = vmatprep.subr.mxu0 0.0
    %2062 = vmatpush2.msra.mxu0 0.0
    %2063 = vmatprep.mubr.f32.mxu0 0.0
    %2064 = vmatmul.mubr.f32.gmra.mxu0 %v1972
    %v2065 = vpop.f32.mrf.mxu0
    %v2066 = vadd.f32 %v1997, %v2065
    %v2067 = vpop.f32.mrf.mxu0
    %2068 = vmatprep.mubr.f32.mxu0 0.0
    %2069 = vmatmul.mubr.f32.gmra.mxu0 %v1973
    %v2070 = vpop.f32.mrf.mxu0
    %v2071 = vadd.f32 %v1997, %v2070
    %v2072 = vpop.f32.mrf.mxu0
    %2073 = vmatprep.mubr.f32.mxu0 0.0
    %2074 = vmatmul.mubr.f32.gmra.mxu0 %v1974
    %v2075 = vpop.f32.mrf.mxu0
    %v2076 = vadd.f32 %v1997, %v2075
    %v2077 = vpop.f32.mrf.mxu0
    %2078 = vmatprep.mubr.f32.mxu0 0.0
    %2079 = vmatmul.mubr.f32.gmra.mxu0 %v1975
    %v2080 = vpop.f32.mrf.mxu0
    %v2081 = vadd.f32 %v1997, %v2080
    %v2082 = vpop.f32.mrf.mxu0
    %2083 = vdwg.mxu0
    %2084 = vst [vmem:[#allocation13] sm:$0xff] %v2066
    %2085 = vst [vmem:[#allocation13 + $0x8] sm:$0xff] %v2071
    %2086 = vst [vmem:[#allocation13 + $0x10] sm:$0xff] %v2076
    %2087 = vst [vmem:[#allocation13 + $0x18] sm:$0xff] %v2081
    // Predicated region
    $region82: #{tpu_custom_call.1} parent=1 // pred_check
      _
    $region83: #{tpu_custom_call.1} parent=1 // pred_check_branch
      %2089 = sbr.rel (0) target = $region85
    $region84: #{tpu_custom_call.1} parent=1 // pred_region
      %s2091 = ssub.s32 512, 512
      %2092 = vsyncadd [#allocation4], %s2091
      %s2093 = sshll.u32 [#allocation13], 4
      %s2094 = int_to_ptr.vmem [resolvable:$true] %s2093
      %2099 = dma.vmem_to_hbm [thread:$0]  %s2094, 512, %s14, [#allocation4], 128, 128, 8
    $region85: #{tpu_custom_call.1} parent=1 // pred_fallthru
      _
    // Predicated region
    $region86: #{tpu_custom_call.1} parent=1 // pred_check
      _
    $region87: #{tpu_custom_call.1} parent=1 // pred_check_branch
      %2101 = sbr.rel (0) target = $region89
    $region88: #{tpu_custom_call.1} parent=1 // pred_region
      %s2103 = ssub.s32 512, 512
      %2104 = vsyncadd [#allocation15], %s2103
      %s2105 = sshll.u32 [#allocation14], 4
      %s2106 = int_to_ptr.vmem [resolvable:$true] %s2105
      %2111 = dma.vmem_to_hbm [thread:$0]  %s2106, 512, %s15, [#allocation15], 128, 128, 8
    $region89: #{tpu_custom_call.1} parent=1 // pred_fallthru
      _
    // Predicated region
    $region90: #{tpu_custom_call.1} parent=1 // pred_check
      _
    $region91: #{tpu_custom_call.1} parent=1 // pred_check_branch
      %2113 = sbr.rel (0) target = $region93
    $region92: #{tpu_custom_call.1} parent=1 // pred_region
      %2114 = dma.done [#allocation4], 512
    $region93: #{tpu_custom_call.1} parent=1 // pred_fallthru
      _
    // Predicated region
    $region94: #{tpu_custom_call.1} parent=1 // pred_check
      _
    $region95: #{tpu_custom_call.1} parent=1 // pred_check_branch
      %2116 = sbr.rel (0) target = $region97
    $region96: #{tpu_custom_call.1} parent=1 // pred_region
      %2117 = dma.done [#allocation15], 512
    $region97: #{tpu_custom_call.1} parent=1 // pred_fallthru
      _
    %2118 = vsyncpa [#allocation3], 1
    %2119 = vsyncpa [#allocation6], 1
    %2120 = vsyncpa [#allocation9], 1
    %2121 = vsyncpa [#allocation12], 1
    %2122 = vsyncpa [#allocation4], 1
    %2123 = vsyncpa [#allocation15], 1

</llo_original>
